<compile_context>
chip_gen: v6e
topology: v6e:2x2x1
jax: 0.10.0
libtpu: 0.0.40
codegen_flags: <defaults>
</compile_context>

<pallas_src>
from functools import partial

import jax
import jax.numpy as jnp
from jax.experimental import pallas as pl
from jax.experimental.pallas import tpu as pltpu


def _round_up(x, m):
    return ((x + m - 1) // m) * m


_VMEM_LIMIT = 32 * 1024 * 1024  # fits v5e (128 MiB), v6e (128 MiB), v7x (64 MiB)

CONV_CFG = ((8, 4, 32), (4, 2, 64), (3, 1, 64))  # (kernel, stride, out_channels)


# ---------------------------------------------------------------------------
# Pallas kernel: out = relu?(A @ W + b)   (A, W bf16; f32 accumulate + bias)
# ---------------------------------------------------------------------------
def _mm_bias_act_kernel(a_ref, w_ref, b_ref, o_ref, *, apply_relu):
    acc = jnp.dot(a_ref[...], w_ref[...], preferred_element_type=jnp.float32)
    acc = acc + b_ref[...]                 # (1, N) broadcasts over M
    if apply_relu:
        acc = jnp.maximum(acc, 0.0)
    o_ref[...] = acc


def matmul_bias_act(x, w_pad, b_pad, *, apply_relu, n_out, tm=512):
    """x: (M, K) f32 -> (M, n_out) f32. w_pad: (Kp, Np) bf16, b_pad: (1, Np) f32."""
    M, K = x.shape
    Kp, Np = w_pad.shape
    TM = min(tm, _round_up(M, 16))
    Mp = _round_up(M, TM)
    xp = jnp.pad(x, ((0, Mp - M), (0, Kp - K))).astype(jnp.bfloat16)

    out = pl.pallas_call(
        partial(_mm_bias_act_kernel, apply_relu=apply_relu),
        out_shape=jax.ShapeDtypeStruct((Mp, Np), jnp.float32),
        grid=(Mp // TM,),
        in_specs=[
            pl.BlockSpec((TM, Kp), lambda i: (i, 0)),   # activation rows: M-tiled
            pl.BlockSpec((Kp, Np), lambda i: (0, 0)),   # weight: VMEM-resident
            pl.BlockSpec((1, Np), lambda i: (0, 0)),    # bias: VMEM-resident
        ],
        out_specs=pl.BlockSpec((TM, Np), lambda i: (i, 0)),
        compiler_params=pltpu.CompilerParams(
            dimension_semantics=("parallel",),
            vmem_limit_bytes=_VMEM_LIMIT,
        ),
    )(xp, w_pad, b_pad)
    return out[:M, :n_out]


# ---------------------------------------------------------------------------
# Fused fc head: q = (relu(x @ W1 + b1)) @ W2 + b2 in a single kernel.
# The 512-wide intermediate stays in VMEM (no HBM round trip).
# ---------------------------------------------------------------------------
def _fc_head_kernel(x_ref, w1_ref, b1_ref, w2_ref, b2_ref, o_ref):
    h = jnp.dot(x_ref[...], w1_ref[...], preferred_element_type=jnp.float32)
    h = jnp.maximum(h + b1_ref[...], 0.0)
    q = jnp.dot(h.astype(jnp.bfloat16), w2_ref[...],
                preferred_element_type=jnp.float32)
    o_ref[...] = q + b2_ref[...]


def fc_head(x, w1_pad, b1_pad, w2_pad, b2_pad, *, num_actions, tm=256):
    M, K = x.shape
    Kp, H = w1_pad.shape          # H == 512
    _, Np = w2_pad.shape
    TM = min(tm, _round_up(M, 16))
    Mp = _round_up(M, TM)
    xp = jnp.pad(x, ((0, Mp - M), (0, Kp - K))).astype(jnp.bfloat16)

    out = pl.pallas_call(
        _fc_head_kernel,
        out_shape=jax.ShapeDtypeStruct((Mp, Np), jnp.float32),
        grid=(Mp // TM,),
        in_specs=[
            pl.BlockSpec((TM, Kp), lambda i: (i, 0)),
            pl.BlockSpec((Kp, H), lambda i: (0, 0)),
            pl.BlockSpec((1, H), lambda i: (0, 0)),
            pl.BlockSpec((H, Np), lambda i: (0, 0)),
            pl.BlockSpec((1, Np), lambda i: (0, 0)),
        ],
        out_specs=pl.BlockSpec((TM, Np), lambda i: (i, 0)),
        compiler_params=pltpu.CompilerParams(
            dimension_semantics=("parallel",),
            vmem_limit_bytes=_VMEM_LIMIT,
        ),
    )(xp, w1_pad, b1_pad, w2_pad, b2_pad)
    return out[:M, :num_actions]


# ---------------------------------------------------------------------------
# Channels-last im2col (data movement only; FLOPs happen in the Pallas kernel)
# TODO(synk): fuse the im2col gather into the Pallas kernel (strided
# make_async_copy per (kh, kw) tap) to avoid the k^2/s^2 HBM patch expansion.
# ---------------------------------------------------------------------------
def _im2col_nhwc(x, k, s):
    """x: (N, H, W, C) -> patches (N*OH*OW, k*k*C), plus (OH, OW)."""
    N, H, W, C = x.shape
    OH = (H - k) // s + 1
    OW = (W - k) // s + 1
    hi = jnp.arange(OH)[:, None] * s + jnp.arange(k)[None, :]   # (OH, k)
    wi = jnp.arange(OW)[:, None] * s + jnp.arange(k)[None, :]   # (OW, k)
    xg = x[:, hi]                        # (N, OH, k, W, C)
    xg = xg[:, :, :, wi]                 # (N, OH, k, OW, k, C)
    patches = xg.transpose(0, 1, 3, 2, 4, 5)     # (N, OH, OW, kh, kw, C)
    return patches.reshape(N * OH * OW, k * k * C), OH, OW


# ---------------------------------------------------------------------------
# Parameters (PyTorch layout) + one-time preparation for the kernels
# ---------------------------------------------------------------------------
def conv_out_size(spatial):
    h = spatial
    for k, s, _ in CONV_CFG:
        h = (h - k) // s + 1
    return h


def init_raw_params(key, in_channels, spatial, num_actions):
    """PyTorch-layout parameters (same init scheme as nn.Conv2d / nn.Linear)."""
    ks = jax.random.split(key, 10)

    def u(k, shape, fan_in):
        bound = 1.0 / jnp.sqrt(fan_in)
        return jax.random.uniform(k, shape, jnp.float32, -bound, bound)

    h3 = conv_out_size(spatial)
    feat = 64 * h3 * h3                          # feature_size() equivalent
    return dict(
        conv1_w=u(ks[0], (32, in_channels, 8, 8), in_channels * 8 * 8),
        conv1_b=u(ks[1], (32,), in_channels * 8 * 8),
        conv2_w=u(ks[2], (64, 32, 4, 4), 32 * 4 * 4),
        conv2_b=u(ks[3], (64,), 32 * 4 * 4),
        conv3_w=u(ks[4], (64, 64, 3, 3), 64 * 3 * 3),
        conv3_b=u(ks[5], (64,), 64 * 3 * 3),
        fc_w=u(ks[6], (512, feat), feat),
        fc_b=u(ks[7], (512,), feat),
        fc2_w=u(ks[8], (num_actions, 512), 512),
        fc2_b=u(ks[9], (num_actions,), 512),
    )


def prepare_params(raw, spatial):
    """One-time weight prep: reshape/transpose to matmul layout, pad K/N to
    multiples of 128, cast matmul operands to bf16 (bias stays f32)."""
    prep = {}

    def pad_wb(wmat, b):
        K, N = wmat.shape
        Kp, Np = _round_up(K, 128), _round_up(N, 128)
        wp = jnp.pad(wmat, ((0, Kp - K), (0, Np - N))).astype(jnp.bfloat16)
        bp = jnp.pad(b.astype(jnp.float32), (0, Np - N)).reshape(1, Np)
        return wp, bp

    for idx, (k, s, oc) in enumerate(CONV_CFG, start=1):
        w = raw[f"conv{idx}_w"]                       # (OC, C, kh, kw)
        c_in = w.shape[1]
        wmat = w.transpose(2, 3, 1, 0).reshape(k * k * c_in, oc)   # (kh*kw*C, OC)
        prep[f"conv{idx}_wp"], prep[f"conv{idx}_bp"] = pad_wb(wmat, raw[f"conv{idx}_b"])

    # fc weights: permute rows so NHWC-flattened features match PyTorch's
    # NCHW x.view(N, -1) flatten order (exact forward semantics preserved).
    h3 = conv_out_size(spatial)
    fc_w = raw["fc_w"].reshape(512, 64, h3, h3).transpose(0, 2, 3, 1).reshape(512, -1)
    prep["fc_w1p"], prep["fc_b1p"] = pad_wb(fc_w.T, raw["fc_b"])
    prep["fc_w2p"], prep["fc_b2p"] = pad_wb(raw["fc2_w"].T, raw["fc2_b"])
    return prep


def qlearner_forward(prep, x, *, num_actions):
    """x: (N, C, H, W) f32 (PyTorch layout) -> q-values (N, num_actions) f32."""
    x = jnp.transpose(x, (0, 2, 3, 1))                # NHWC through the conv stack
    for idx, (k, s, oc) in enumerate(CONV_CFG, start=1):
        n = x.shape[0]
        patches, OH, OW = _im2col_nhwc(x, k, s)
        y = matmul_bias_act(patches, prep[f"conv{idx}_wp"], prep[f"conv{idx}_bp"],
                            apply_relu=True, n_out=oc, tm=512)
        x = y.reshape(n, OH, OW, oc)
    n = x.shape[0]
    feats = x.reshape(n, -1)                          # x.view(x.size(0), -1)
    return fc_head(feats, prep["fc_w1p"], prep["fc_b1p"],
                   prep["fc_w2p"], prep["fc_b2p"],
                   num_actions=num_actions, tm=256)


if __name__ == "__main__":
    # Small, forward-consistent shapes: batch=2, channels=4 (frame stack),
    # spatial=48 -> conv stack yields 2x2x64 = 256 features; num_actions=6.
    batch, channels, spatial, num_actions = 2, 4, 48, 6

    key = jax.random.PRNGKey(0)
    pkey, xkey = jax.random.split(key)
    raw = init_raw_params(pkey, channels, spatial, num_actions)
    prep = prepare_params(raw, spatial)
    x = jax.random.normal(xkey, (batch, channels, spatial, spatial), jnp.float32)

    fwd = jax.jit(partial(qlearner_forward, num_actions=num_actions))
    q = fwd(prep, x)
    jax.block_until_ready(q)
    assert q.shape == (batch, num_actions) and q.dtype == jnp.float32
    print("KERNEL_OK")
</pallas_src>

<mosaic_0001>
module attributes {stable_mosaic.version = 11 : i64} {
  func.func @_mm_bias_act_kernel(%arg0: i32, %arg1: memref<256x256xbf16, #tpu.memory_space<vmem>>, %arg2: memref<256x128xbf16, #tpu.memory_space<vmem>>, %arg3: memref<1x128xf32, #tpu.memory_space<vmem>>, %arg4: memref<256x128xf32, #tpu.memory_space<vmem>>) attributes {dimension_semantics = [#tpu.dimension_semantics<parallel>], iteration_bounds = array<i64: 1>, scalar_prefetch = 0 : i64, scratch_operands = 0 : i64, tpu.core_type = #tpu.core_type<tc>, window_params = [{transform_indices = @transform_0, window_bounds = array<i64: 256, 256>}, {pipeline_mode = #tpu.pipeline_mode<synchronous>, transform_indices = @transform_1, window_bounds = array<i64: 256, 128>}, {pipeline_mode = #tpu.pipeline_mode<synchronous>, transform_indices = @transform_2, window_bounds = array<i64: 1, 128>}, {transform_indices = @transform_3, window_bounds = array<i64: 256, 128>}]} {
    %c0 = arith.constant 0 : index
    %c0_0 = arith.constant 0 : index
    %0 = vector.load %arg1[%c0, %c0_0] : memref<256x256xbf16, #tpu.memory_space<vmem>>, vector<256x256xbf16>
    %c0_1 = arith.constant 0 : index
    %c0_2 = arith.constant 0 : index
    %1 = vector.load %arg2[%c0_1, %c0_2] : memref<256x128xbf16, #tpu.memory_space<vmem>>, vector<256x128xbf16>
    %cst = arith.constant dense<0.000000e+00> : vector<256x128xf32>
    %2 = tpu.matmul %0, %1, %cst {dimension_numbers = #tpu.dot_dimension_numbers<[1], [0], [0], [1], [0, 0, 1, 1], [], []>} : vector<256x256xbf16>, vector<256x128xbf16>, vector<256x128xf32> -> vector<256x128xf32>
    %c0_3 = arith.constant 0 : index
    %c0_4 = arith.constant 0 : index
    %3 = vector.load %arg3[%c0_3, %c0_4] : memref<1x128xf32, #tpu.memory_space<vmem>>, vector<1x128xf32>
    %4 = vector.broadcast %3 : vector<1x128xf32> to vector<256x128xf32>
    %5 = arith.addf %2, %4 : vector<256x128xf32>
    %cst_5 = arith.constant 0.000000e+00 : f32
    %6 = vector.broadcast %cst_5 : f32 to vector<256x128xf32>
    %7 = arith.maximumf %5, %6 : vector<256x128xf32>
    %c0_6 = arith.constant 0 : index
    %c0_7 = arith.constant 0 : index
    %8 = vector.load %arg4[%c0_6, %c0_7] : memref<256x128xf32, #tpu.memory_space<vmem>>, vector<256x128xf32>
    tpu.vector_store %arg4[%c0_6, %c0_7], %7 {strides = array<i32>} : memref<256x128xf32, #tpu.memory_space<vmem>>, vector<256x128xf32>,
    return
  }
  func.func @transform_0(%arg0: i32) -> (i32, i32) {
    %c0_i32 = arith.constant 0 : i32
    %c0_i32_0 = arith.constant 0 : i32
    return %arg0, %c0_i32 : i32, i32
  }
  func.func @transform_1(%arg0: i32) -> (i32, i32) {
    %c0_i32 = arith.constant 0 : i32
    %c0_i32_0 = arith.constant 0 : i32
    %c0_i32_1 = arith.constant 0 : i32
    return %c0_i32, %c0_i32_0 : i32, i32
  }
  func.func @transform_2(%arg0: i32) -> (i32, i32) {
    %c0_i32 = arith.constant 0 : i32
    %c0_i32_0 = arith.constant 0 : i32
    %c0_i32_1 = arith.constant 0 : i32
    return %c0_i32, %c0_i32_0 : i32, i32
  }
  func.func @transform_3(%arg0: i32) -> (i32, i32) {
    %c0_i32 = arith.constant 0 : i32
    %c0_i32_0 = arith.constant 0 : i32
    return %arg0, %c0_i32 : i32, i32
  }
}

module attributes {stable_mosaic.version = 11 : i64} {
  func.func @_mm_bias_act_kernel(%arg0: i32, %arg1: memref<32x512xbf16, #tpu.memory_space<vmem>>, %arg2: memref<512x128xbf16, #tpu.memory_space<vmem>>, %arg3: memref<1x128xf32, #tpu.memory_space<vmem>>, %arg4: memref<32x128xf32, #tpu.memory_space<vmem>>) attributes {dimension_semantics = [#tpu.dimension_semantics<parallel>], iteration_bounds = array<i64: 1>, scalar_prefetch = 0 : i64, scratch_operands = 0 : i64, tpu.core_type = #tpu.core_type<tc>, window_params = [{transform_indices = @transform_0, window_bounds = array<i64: 32, 512>}, {pipeline_mode = #tpu.pipeline_mode<synchronous>, transform_indices = @transform_1, window_bounds = array<i64: 512, 128>}, {pipeline_mode = #tpu.pipeline_mode<synchronous>, transform_indices = @transform_2, window_bounds = array<i64: 1, 128>}, {transform_indices = @transform_3, window_bounds = array<i64: 32, 128>}]} {
    %c0 = arith.constant 0 : index
    %c0_0 = arith.constant 0 : index
    %0 = vector.load %arg1[%c0, %c0_0] : memref<32x512xbf16, #tpu.memory_space<vmem>>, vector<32x512xbf16>
    %c0_1 = arith.constant 0 : index
    %c0_2 = arith.constant 0 : index
    %1 = vector.load %arg2[%c0_1, %c0_2] : memref<512x128xbf16, #tpu.memory_space<vmem>>, vector<512x128xbf16>
    %cst = arith.constant dense<0.000000e+00> : vector<32x128xf32>
    %2 = tpu.matmul %0, %1, %cst {dimension_numbers = #tpu.dot_dimension_numbers<[1], [0], [0], [1], [0, 0, 1, 1], [], []>} : vector<32x512xbf16>, vector<512x128xbf16>, vector<32x128xf32> -> vector<32x128xf32>
    %c0_3 = arith.constant 0 : index
    %c0_4 = arith.constant 0 : index
    %3 = vector.load %arg3[%c0_3, %c0_4] : memref<1x128xf32, #tpu.memory_space<vmem>>, vector<1x128xf32>
    %4 = vector.broadcast %3 : vector<1x128xf32> to vector<32x128xf32>
    %5 = arith.addf %2, %4 : vector<32x128xf32>
    %cst_5 = arith.constant 0.000000e+00 : f32
    %6 = vector.broadcast %cst_5 : f32 to vector<32x128xf32>
    %7 = arith.maximumf %5, %6 : vector<32x128xf32>
    %c0_6 = arith.constant 0 : index
    %c0_7 = arith.constant 0 : index
    %8 = vector.load %arg4[%c0_6, %c0_7] : memref<32x128xf32, #tpu.memory_space<vmem>>, vector<32x128xf32>
    tpu.vector_store %arg4[%c0_6, %c0_7], %7 {strides = array<i32>} : memref<32x128xf32, #tpu.memory_space<vmem>>, vector<32x128xf32>,
    return
  }
  func.func @transform_0(%arg0: i32) -> (i32, i32) {
    %c0_i32 = arith.constant 0 : i32
    %c0_i32_0 = arith.constant 0 : i32
    return %arg0, %c0_i32 : i32, i32
  }
  func.func @transform_1(%arg0: i32) -> (i32, i32) {
    %c0_i32 = arith.constant 0 : i32
    %c0_i32_0 = arith.constant 0 : i32
    %c0_i32_1 = arith.constant 0 : i32
    return %c0_i32, %c0_i32_0 : i32, i32
  }
  func.func @transform_2(%arg0: i32) -> (i32, i32) {
    %c0_i32 = arith.constant 0 : i32
    %c0_i32_0 = arith.constant 0 : i32
    %c0_i32_1 = arith.constant 0 : i32
    return %c0_i32, %c0_i32_0 : i32, i32
  }
  func.func @transform_3(%arg0: i32) -> (i32, i32) {
    %c0_i32 = arith.constant 0 : i32
    %c0_i32_0 = arith.constant 0 : i32
    return %arg0, %c0_i32 : i32, i32
  }
}

module attributes {stable_mosaic.version = 11 : i64} {
  func.func @_mm_bias_act_kernel(%arg0: i32, %arg1: memref<16x640xbf16, #tpu.memory_space<vmem>>, %arg2: memref<640x128xbf16, #tpu.memory_space<vmem>>, %arg3: memref<1x128xf32, #tpu.memory_space<vmem>>, %arg4: memref<16x128xf32, #tpu.memory_space<vmem>>) attributes {dimension_semantics = [#tpu.dimension_semantics<parallel>], iteration_bounds = array<i64: 1>, scalar_prefetch = 0 : i64, scratch_operands = 0 : i64, tpu.core_type = #tpu.core_type<tc>, window_params = [{transform_indices = @transform_0, window_bounds = array<i64: 16, 640>}, {pipeline_mode = #tpu.pipeline_mode<synchronous>, transform_indices = @transform_1, window_bounds = array<i64: 640, 128>}, {pipeline_mode = #tpu.pipeline_mode<synchronous>, transform_indices = @transform_2, window_bounds = array<i64: 1, 128>}, {transform_indices = @transform_3, window_bounds = array<i64: 16, 128>}]} {
    %c0 = arith.constant 0 : index
    %c0_0 = arith.constant 0 : index
    %0 = vector.load %arg1[%c0, %c0_0] : memref<16x640xbf16, #tpu.memory_space<vmem>>, vector<16x640xbf16>
    %c0_1 = arith.constant 0 : index
    %c0_2 = arith.constant 0 : index
    %1 = vector.load %arg2[%c0_1, %c0_2] : memref<640x128xbf16, #tpu.memory_space<vmem>>, vector<640x128xbf16>
    %cst = arith.constant dense<0.000000e+00> : vector<16x128xf32>
    %2 = tpu.matmul %0, %1, %cst {dimension_numbers = #tpu.dot_dimension_numbers<[1], [0], [0], [1], [0, 0, 1, 1], [], []>} : vector<16x640xbf16>, vector<640x128xbf16>, vector<16x128xf32> -> vector<16x128xf32>
    %c0_3 = arith.constant 0 : index
    %c0_4 = arith.constant 0 : index
    %3 = vector.load %arg3[%c0_3, %c0_4] : memref<1x128xf32, #tpu.memory_space<vmem>>, vector<1x128xf32>
    %4 = vector.broadcast %3 : vector<1x128xf32> to vector<16x128xf32>
    %5 = arith.addf %2, %4 : vector<16x128xf32>
    %cst_5 = arith.constant 0.000000e+00 : f32
    %6 = vector.broadcast %cst_5 : f32 to vector<16x128xf32>
    %7 = arith.maximumf %5, %6 : vector<16x128xf32>
    %c0_6 = arith.constant 0 : index
    %c0_7 = arith.constant 0 : index
    %8 = vector.load %arg4[%c0_6, %c0_7] : memref<16x128xf32, #tpu.memory_space<vmem>>, vector<16x128xf32>
    tpu.vector_store %arg4[%c0_6, %c0_7], %7 {strides = array<i32>} : memref<16x128xf32, #tpu.memory_space<vmem>>, vector<16x128xf32>,
    return
  }
  func.func @transform_0(%arg0: i32) -> (i32, i32) {
    %c0_i32 = arith.constant 0 : i32
    %c0_i32_0 = arith.constant 0 : i32
    return %arg0, %c0_i32 : i32, i32
  }
  func.func @transform_1(%arg0: i32) -> (i32, i32) {
    %c0_i32 = arith.constant 0 : i32
    %c0_i32_0 = arith.constant 0 : i32
    %c0_i32_1 = arith.constant 0 : i32
    return %c0_i32, %c0_i32_0 : i32, i32
  }
  func.func @transform_2(%arg0: i32) -> (i32, i32) {
    %c0_i32 = arith.constant 0 : i32
    %c0_i32_0 = arith.constant 0 : i32
    %c0_i32_1 = arith.constant 0 : i32
    return %c0_i32, %c0_i32_0 : i32, i32
  }
  func.func @transform_3(%arg0: i32) -> (i32, i32) {
    %c0_i32 = arith.constant 0 : i32
    %c0_i32_0 = arith.constant 0 : i32
    return %arg0, %c0_i32 : i32, i32
  }
}

module attributes {stable_mosaic.version = 11 : i64} {
  func.func @_fc_head_kernel(%arg0: i32, %arg1: memref<16x256xbf16, #tpu.memory_space<vmem>>, %arg2: memref<256x512xbf16, #tpu.memory_space<vmem>>, %arg3: memref<1x512xf32, #tpu.memory_space<vmem>>, %arg4: memref<512x128xbf16, #tpu.memory_space<vmem>>, %arg5: memref<1x128xf32, #tpu.memory_space<vmem>>, %arg6: memref<16x128xf32, #tpu.memory_space<vmem>>) attributes {dimension_semantics = [#tpu.dimension_semantics<parallel>], iteration_bounds = array<i64: 1>, scalar_prefetch = 0 : i64, scratch_operands = 0 : i64, tpu.core_type = #tpu.core_type<tc>, window_params = [{transform_indices = @transform_0, window_bounds = array<i64: 16, 256>}, {pipeline_mode = #tpu.pipeline_mode<synchronous>, transform_indices = @transform_1, window_bounds = array<i64: 256, 512>}, {pipeline_mode = #tpu.pipeline_mode<synchronous>, transform_indices = @transform_2, window_bounds = array<i64: 1, 512>}, {pipeline_mode = #tpu.pipeline_mode<synchronous>, transform_indices = @transform_3, window_bounds = array<i64: 512, 128>}, {pipeline_mode = #tpu.pipeline_mode<synchronous>, transform_indices = @transform_4, window_bounds = array<i64: 1, 128>}, {transform_indices = @transform_5, window_bounds = array<i64: 16, 128>}]} {
    %c0 = arith.constant 0 : index
    %c0_0 = arith.constant 0 : index
    %0 = vector.load %arg1[%c0, %c0_0] : memref<16x256xbf16, #tpu.memory_space<vmem>>, vector<16x256xbf16>
    %c0_1 = arith.constant 0 : index
    %c0_2 = arith.constant 0 : index
    %1 = vector.load %arg2[%c0_1, %c0_2] : memref<256x512xbf16, #tpu.memory_space<vmem>>, vector<256x512xbf16>
    %cst = arith.constant dense<0.000000e+00> : vector<16x512xf32>
    %2 = tpu.matmul %0, %1, %cst {dimension_numbers = #tpu.dot_dimension_numbers<[1], [0], [0], [1], [0, 0, 1, 1], [], []>} : vector<16x256xbf16>, vector<256x512xbf16>, vector<16x512xf32> -> vector<16x512xf32>
    %c0_3 = arith.constant 0 : index
    %c0_4 = arith.constant 0 : index
    %3 = vector.load %arg3[%c0_3, %c0_4] : memref<1x512xf32, #tpu.memory_space<vmem>>, vector<1x512xf32>
    %4 = vector.broadcast %3 : vector<1x512xf32> to vector<16x512xf32>
    %5 = arith.addf %2, %4 : vector<16x512xf32>
    %cst_5 = arith.constant 0.000000e+00 : f32
    %6 = vector.broadcast %cst_5 : f32 to vector<16x512xf32>
    %7 = arith.maximumf %5, %6 : vector<16x512xf32>
    %8 = arith.truncf %7 : vector<16x512xf32> to vector<16x512xbf16>
    %c0_6 = arith.constant 0 : index
    %c0_7 = arith.constant 0 : index
    %9 = vector.load %arg4[%c0_6, %c0_7] : memref<512x128xbf16, #tpu.memory_space<vmem>>, vector<512x128xbf16>
    %cst_8 = arith.constant dense<0.000000e+00> : vector<16x128xf32>
    %10 = tpu.matmul %8, %9, %cst_8 {dimension_numbers = #tpu.dot_dimension_numbers<[1], [0], [0], [1], [0, 0, 1, 1], [], []>} : vector<16x512xbf16>, vector<512x128xbf16>, vector<16x128xf32> -> vector<16x128xf32>
    %c0_9 = arith.constant 0 : index
    %c0_10 = arith.constant 0 : index
    %11 = vector.load %arg5[%c0_9, %c0_10] : memref<1x128xf32, #tpu.memory_space<vmem>>, vector<1x128xf32>
    %12 = vector.broadcast %11 : vector<1x128xf32> to vector<16x128xf32>
    %13 = arith.addf %10, %12 : vector<16x128xf32>
    %c0_11 = arith.constant 0 : index
    %c0_12 = arith.constant 0 : index
    %14 = vector.load %arg6[%c0_11, %c0_12] : memref<16x128xf32, #tpu.memory_space<vmem>>, vector<16x128xf32>
    tpu.vector_store %arg6[%c0_11, %c0_12], %13 {strides = array<i32>} : memref<16x128xf32, #tpu.memory_space<vmem>>, vector<16x128xf32>,
    return
  }
  func.func @transform_0(%arg0: i32) -> (i32, i32) {
    %c0_i32 = arith.constant 0 : i32
    %c0_i32_0 = arith.constant 0 : i32
    return %arg0, %c0_i32 : i32, i32
  }
  func.func @transform_1(%arg0: i32) -> (i32, i32) {
    %c0_i32 = arith.constant 0 : i32
    %c0_i32_0 = arith.constant 0 : i32
    %c0_i32_1 = arith.constant 0 : i32
    return %c0_i32, %c0_i32_0 : i32, i32
  }
  func.func @transform_2(%arg0: i32) -> (i32, i32) {
    %c0_i32 = arith.constant 0 : i32
    %c0_i32_0 = arith.constant 0 : i32
    %c0_i32_1 = arith.constant 0 : i32
    return %c0_i32, %c0_i32_0 : i32, i32
  }
  func.func @transform_3(%arg0: i32) -> (i32, i32) {
    %c0_i32 = arith.constant 0 : i32
    %c0_i32_0 = arith.constant 0 : i32
    %c0_i32_1 = arith.constant 0 : i32
    return %c0_i32, %c0_i32_0 : i32, i32
  }
  func.func @transform_4(%arg0: i32) -> (i32, i32) {
    %c0_i32 = arith.constant 0 : i32
    %c0_i32_0 = arith.constant 0 : i32
    %c0_i32_1 = arith.constant 0 : i32
    return %c0_i32, %c0_i32_0 : i32, i32
  }
  func.func @transform_5(%arg0: i32) -> (i32, i32) {
    %c0_i32 = arith.constant 0 : i32
    %c0_i32_0 = arith.constant 0 : i32
    return %arg0, %c0_i32 : i32, i32
  }
}

</mosaic_0001>

<llo_original>
// kernel: qlearner_forward.4
$region0: #{qlearner_forward.4}
  #allocation0 [shape = 'u32[]', space=smem, size = 0x4, offset = 0x4, fixed_abs, tag = 'smem constant byte address 0x4 - core index']
  #allocation1 [shape = 'u32[144,128]{1,0:T(1,128)}', space=vmem, size = 0x12000, scoped, tag = 'internal scratch']
  %s0 = inlined_call_operand.vmem [shape: bf16[256,256], index: 0, kind: input, shape index: {}]
  %s1 = inlined_call_operand.vmem [shape: bf16[256,128], index: 1, kind: input, shape index: {}]
  %s2 = inlined_call_operand.vmem [shape: f32[1,128], index: 2, kind: input, shape index: {}]
  %s3 = inlined_call_operand.vmem [shape: f32[256,128], index: 3, kind: output, shape index: {}]
  %s4 = sld [smem:[#allocation0]]
  $region22: #{qlearner_forward.4} parent=0
    _
  %s6 = ssub.s32 1, %s4
  %s7 = scalar_select 0, %s6, %s4
  // Predicated region
  $region2: #{qlearner_forward.4} parent=0 // pred_check
    _
  $region3: #{qlearner_forward.4} parent=0 // pred_check_branch
    %9 = sbr.rel (0) target = $region5
  $region4: #{qlearner_forward.4} parent=0 // pred_region
    _
  $region5: #{qlearner_forward.4} parent=0 // pred_fallthru
    _
  // Predicated region
  $region6: #{qlearner_forward.4} parent=0 // pred_check
    _
  $region7: #{qlearner_forward.4} parent=0 // pred_check_branch
    %11 = sbr.rel (0) target = $region9
  $region8: #{qlearner_forward.4} parent=0 // pred_region
    _
  $region9: #{qlearner_forward.4} parent=0 // pred_fallthru
    _
  // Predicated region
  $region10: #{qlearner_forward.4} parent=0 // pred_check
    _
  $region11: #{qlearner_forward.4} parent=0 // pred_check_branch
    %13 = sbr.rel (0) target = $region13
  $region12: #{qlearner_forward.4} parent=0 // pred_region
    _
  $region13: #{qlearner_forward.4} parent=0 // pred_fallthru
    _
  %v15 = vld [vmem:[%s0] sm:$0xff]
  %v16 = vld [vmem:[%s0 + $0x8] sm:$0xff]
  %v17 = vld [vmem:[%s0 + $0x10] sm:$0xff]
  %v18 = vld [vmem:[%s0 + $0x18] sm:$0xff]
  %v19 = vld [vmem:[%s0 + $0x20] sm:$0xff]
  %v20 = vld [vmem:[%s0 + $0x28] sm:$0xff]
  %v21 = vld [vmem:[%s0 + $0x30] sm:$0xff]
  %v22 = vld [vmem:[%s0 + $0x38] sm:$0xff]
  %v23 = vld [vmem:[%s0 + $0x40] sm:$0xff]
  %v24 = vld [vmem:[%s0 + $0x48] sm:$0xff]
  %v25 = vld [vmem:[%s0 + $0x50] sm:$0xff]
  %v26 = vld [vmem:[%s0 + $0x58] sm:$0xff]
  %v27 = vld [vmem:[%s0 + $0x60] sm:$0xff]
  %v28 = vld [vmem:[%s0 + $0x68] sm:$0xff]
  %v29 = vld [vmem:[%s0 + $0x70] sm:$0xff]
  %v30 = vld [vmem:[%s0 + $0x78] sm:$0xff]
  %v31 = vld [vmem:[%s0 + $0x80] sm:$0xff]
  %v32 = vld [vmem:[%s0 + $0x88] sm:$0xff]
  %v33 = vld [vmem:[%s0 + $0x90] sm:$0xff]
  %v34 = vld [vmem:[%s0 + $0x98] sm:$0xff]
  %v35 = vld [vmem:[%s0 + $0xa0] sm:$0xff]
  %v36 = vld [vmem:[%s0 + $0xa8] sm:$0xff]
  %v37 = vld [vmem:[%s0 + $0xb0] sm:$0xff]
  %v38 = vld [vmem:[%s0 + $0xb8] sm:$0xff]
  %v39 = vld [vmem:[%s0 + $0xc0] sm:$0xff]
  %v40 = vld [vmem:[%s0 + $0xc8] sm:$0xff]
  %v41 = vld [vmem:[%s0 + $0xd0] sm:$0xff]
  %v42 = vld [vmem:[%s0 + $0xd8] sm:$0xff]
  %v43 = vld [vmem:[%s0 + $0xe0] sm:$0xff]
  %v44 = vld [vmem:[%s0 + $0xe8] sm:$0xff]
  %v45 = vld [vmem:[%s0 + $0xf0] sm:$0xff]
  %v46 = vld [vmem:[%s0 + $0xf8] sm:$0xff]
  %v47 = vld [vmem:[%s1] sm:$0xf]
  %v48 = vld [vmem:[%s1 + $0x4] sm:$0xf]
  %v49 = vld [vmem:[%s1 + $0x8] sm:$0xf]
  %v50 = vld [vmem:[%s1 + $0xc] sm:$0xf]
  %v51 = vld [vmem:[%s1 + $0x10] sm:$0xf]
  %v52 = vld [vmem:[%s1 + $0x14] sm:$0xf]
  %v53 = vld [vmem:[%s1 + $0x18] sm:$0xf]
  %v54 = vld [vmem:[%s1 + $0x1c] sm:$0xf]
  %v55 = vld [vmem:[%s1 + $0x20] sm:$0xf]
  %v56 = vld [vmem:[%s1 + $0x24] sm:$0xf]
  %v57 = vld [vmem:[%s1 + $0x28] sm:$0xf]
  %v58 = vld [vmem:[%s1 + $0x2c] sm:$0xf]
  %v59 = vld [vmem:[%s1 + $0x30] sm:$0xf]
  %v60 = vld [vmem:[%s1 + $0x34] sm:$0xf]
  %v61 = vld [vmem:[%s1 + $0x38] sm:$0xf]
  %v62 = vld [vmem:[%s1 + $0x3c] sm:$0xf]
  %v63 = vld [vmem:[%s1 + $0x40] sm:$0xf]
  %v64 = vld [vmem:[%s1 + $0x44] sm:$0xf]
  %v65 = vld [vmem:[%s1 + $0x48] sm:$0xf]
  %v66 = vld [vmem:[%s1 + $0x4c] sm:$0xf]
  %v67 = vld [vmem:[%s1 + $0x50] sm:$0xf]
  %v68 = vld [vmem:[%s1 + $0x54] sm:$0xf]
  %v69 = vld [vmem:[%s1 + $0x58] sm:$0xf]
  %v70 = vld [vmem:[%s1 + $0x5c] sm:$0xf]
  %v71 = vld [vmem:[%s1 + $0x60] sm:$0xf]
  %v72 = vld [vmem:[%s1 + $0x64] sm:$0xf]
  %v73 = vld [vmem:[%s1 + $0x68] sm:$0xf]
  %v74 = vld [vmem:[%s1 + $0x6c] sm:$0xf]
  %v75 = vld [vmem:[%s1 + $0x70] sm:$0xf]
  %v76 = vld [vmem:[%s1 + $0x74] sm:$0xf]
  %v77 = vld [vmem:[%s1 + $0x78] sm:$0xf]
  %v78 = vld [vmem:[%s1 + $0x7c] sm:$0xf]
  %v79 = vld [vmem:[%s2] sm:$0x1]
  %v81 = vlaneseq
  %v82 = vshrl.u32 %v81, 7
  %v83 = vsub.s32 0, %v82
  %v84 = vrot.slane %v79, %v83
  %v118 = vunpack.c.l.b16 %v15
  %v119 = vunpack.c.h.b16 %v15
  %v120 = vunpack.c.l.b16 %v16
  %v121 = vunpack.c.h.b16 %v16
  %v122 = vunpack.c.l.b16 %v17
  %v123 = vunpack.c.h.b16 %v17
  %v124 = vunpack.c.l.b16 %v18
  %v125 = vunpack.c.h.b16 %v18
  %v126 = vunpack.c.l.b16 %v19
  %v127 = vunpack.c.h.b16 %v19
  %v128 = vunpack.c.l.b16 %v20
  %v129 = vunpack.c.h.b16 %v20
  %v130 = vunpack.c.l.b16 %v21
  %v131 = vunpack.c.h.b16 %v21
  %v132 = vunpack.c.l.b16 %v22
  %v133 = vunpack.c.h.b16 %v22
  %v134 = vunpack.c.l.b16 %v23
  %v135 = vunpack.c.h.b16 %v23
  %v136 = vunpack.c.l.b16 %v24
  %v137 = vunpack.c.h.b16 %v24
  %v138 = vunpack.c.l.b16 %v25
  %v139 = vunpack.c.h.b16 %v25
  %v140 = vunpack.c.l.b16 %v26
  %v141 = vunpack.c.h.b16 %v26
  %v142 = vunpack.c.l.b16 %v27
  %v143 = vunpack.c.h.b16 %v27
  %v144 = vunpack.c.l.b16 %v28
  %v145 = vunpack.c.h.b16 %v28
  %v146 = vunpack.c.l.b16 %v29
  %v147 = vunpack.c.h.b16 %v29
  %v148 = vunpack.c.l.b16 %v30
  %v149 = vunpack.c.h.b16 %v30
  %v150 = vunpack.c.l.b16 %v31
  %v151 = vunpack.c.h.b16 %v31
  %v152 = vunpack.c.l.b16 %v32
  %v153 = vunpack.c.h.b16 %v32
  %v154 = vunpack.c.l.b16 %v33
  %v155 = vunpack.c.h.b16 %v33
  %v156 = vunpack.c.l.b16 %v34
  %v157 = vunpack.c.h.b16 %v34
  %v158 = vunpack.c.l.b16 %v35
  %v159 = vunpack.c.h.b16 %v35
  %v160 = vunpack.c.l.b16 %v36
  %v161 = vunpack.c.h.b16 %v36
  %v162 = vunpack.c.l.b16 %v37
  %v163 = vunpack.c.h.b16 %v37
  %v164 = vunpack.c.l.b16 %v38
  %v165 = vunpack.c.h.b16 %v38
  %v166 = vunpack.c.l.b16 %v39
  %v167 = vunpack.c.h.b16 %v39
  %v168 = vunpack.c.l.b16 %v40
  %v169 = vunpack.c.h.b16 %v40
  %v170 = vunpack.c.l.b16 %v41
  %v171 = vunpack.c.h.b16 %v41
  %v172 = vunpack.c.l.b16 %v42
  %v173 = vunpack.c.h.b16 %v42
  %v174 = vunpack.c.l.b16 %v43
  %v175 = vunpack.c.h.b16 %v43
  %v176 = vunpack.c.l.b16 %v44
  %v177 = vunpack.c.h.b16 %v44
  %v178 = vunpack.c.l.b16 %v45
  %v179 = vunpack.c.h.b16 %v45
  %v180 = vunpack.c.l.b16 %v46
  %v181 = vunpack.c.h.b16 %v46
  %v182 = vpack.c.b16 %v120, %v118
  %v183 = vpack.c.b16 %v121, %v119
  %v184 = vpack.c.b16 %v124, %v122
  %v185 = vpack.c.b16 %v125, %v123
  %v186 = vpack.c.b16 %v128, %v126
  %v187 = vpack.c.b16 %v129, %v127
  %v188 = vpack.c.b16 %v132, %v130
  %v189 = vpack.c.b16 %v133, %v131
  %v190 = vpack.c.b16 %v136, %v134
  %v191 = vpack.c.b16 %v137, %v135
  %v192 = vpack.c.b16 %v140, %v138
  %v193 = vpack.c.b16 %v141, %v139
  %v194 = vpack.c.b16 %v144, %v142
  %v195 = vpack.c.b16 %v145, %v143
  %v196 = vpack.c.b16 %v148, %v146
  %v197 = vpack.c.b16 %v149, %v147
  %v198 = vpack.c.b16 %v152, %v150
  %v199 = vpack.c.b16 %v153, %v151
  %v200 = vpack.c.b16 %v156, %v154
  %v201 = vpack.c.b16 %v157, %v155
  %v202 = vpack.c.b16 %v160, %v158
  %v203 = vpack.c.b16 %v161, %v159
  %v204 = vpack.c.b16 %v164, %v162
  %v205 = vpack.c.b16 %v165, %v163
  %v206 = vpack.c.b16 %v168, %v166
  %v207 = vpack.c.b16 %v169, %v167
  %v208 = vpack.c.b16 %v172, %v170
  %v209 = vpack.c.b16 %v173, %v171
  %v210 = vpack.c.b16 %v176, %v174
  %v211 = vpack.c.b16 %v177, %v175
  %v212 = vpack.c.b16 %v180, %v178
  %v213 = vpack.c.b16 %v181, %v179
  %v278 = vunpack.c.l.b16 %v47
  %v279 = vunpack.c.l.b16 %v48
  %v280 = vunpack.c.l.b16 %v49
  %v281 = vunpack.c.l.b16 %v50
  %v282 = vunpack.c.l.b16 %v51
  %v283 = vunpack.c.l.b16 %v52
  %v284 = vunpack.c.l.b16 %v53
  %v285 = vunpack.c.l.b16 %v54
  %v286 = vunpack.c.l.b16 %v55
  %v287 = vunpack.c.l.b16 %v56
  %v288 = vunpack.c.l.b16 %v57
  %v289 = vunpack.c.l.b16 %v58
  %v290 = vunpack.c.l.b16 %v59
  %v291 = vunpack.c.l.b16 %v60
  %v292 = vunpack.c.l.b16 %v61
  %v293 = vunpack.c.l.b16 %v62
  %v294 = vunpack.c.l.b16 %v63
  %v295 = vunpack.c.l.b16 %v64
  %v296 = vunpack.c.l.b16 %v65
  %v297 = vunpack.c.l.b16 %v66
  %v298 = vunpack.c.l.b16 %v67
  %v299 = vunpack.c.l.b16 %v68
  %v300 = vunpack.c.l.b16 %v69
  %v301 = vunpack.c.l.b16 %v70
  %v302 = vunpack.c.l.b16 %v71
  %v303 = vunpack.c.l.b16 %v72
  %v304 = vunpack.c.l.b16 %v73
  %v305 = vunpack.c.l.b16 %v74
  %v306 = vunpack.c.l.b16 %v75
  %v307 = vunpack.c.l.b16 %v76
  %v308 = vunpack.c.l.b16 %v77
  %v309 = vunpack.c.l.b16 %v78
  %v310 = vpack.c.b16 %v279, %v278
  %v311 = vpack.c.b16 %v281, %v280
  %v312 = vpack.c.b16 %v283, %v282
  %v313 = vpack.c.b16 %v285, %v284
  %v314 = vpack.c.b16 %v287, %v286
  %v315 = vpack.c.b16 %v289, %v288
  %v316 = vpack.c.b16 %v291, %v290
  %v317 = vpack.c.b16 %v293, %v292
  %v318 = vpack.c.b16 %v295, %v294
  %v319 = vpack.c.b16 %v297, %v296
  %v320 = vpack.c.b16 %v299, %v298
  %v321 = vpack.c.b16 %v301, %v300
  %v322 = vpack.c.b16 %v303, %v302
  %v323 = vpack.c.b16 %v305, %v304
  %v324 = vpack.c.b16 %v307, %v306
  %v325 = vpack.c.b16 %v309, %v308
  %342 = vmatprep.subr.bf16.mxu0 0
  %343 = vmatpush1.bf16.msra.mxu0 %v317
  %344 = vmatprep.subr.bf16.mxu0 0
  %345 = vmatpush1.bf16.msra.mxu0 %v316
  %346 = vmatprep.subr.bf16.mxu0 0
  %347 = vmatpush1.bf16.msra.mxu0 %v315
  %348 = vmatprep.subr.bf16.mxu0 0
  %349 = vmatpush1.bf16.msra.mxu0 %v314
  %350 = vmatprep.subr.bf16.mxu0 0
  %351 = vmatpush1.bf16.msra.mxu0 %v313
  %352 = vmatprep.subr.bf16.mxu0 0
  %353 = vmatpush1.bf16.msra.mxu0 %v312
  %354 = vmatprep.subr.bf16.mxu0 0
  %355 = vmatpush1.bf16.msra.mxu0 %v311
  %356 = vmatprep.subr.bf16.mxu0 0
  %357 = vmatpush1.bf16.msra.mxu0 %v310
  %358 = vmatprep.subr.bf16.mxu0 0
  %359 = vmatpush2.bf16.msra.mxu0 %v325
  %360 = vmatprep.subr.bf16.mxu0 0
  %361 = vmatpush2.bf16.msra.mxu0 %v324
  %362 = vmatprep.subr.bf16.mxu0 0
  %363 = vmatpush2.bf16.msra.mxu0 %v323
  %364 = vmatprep.subr.bf16.mxu0 0
  %365 = vmatpush2.bf16.msra.mxu0 %v322
  %366 = vmatprep.subr.bf16.mxu0 0
  %367 = vmatpush2.bf16.msra.mxu0 %v321
  %368 = vmatprep.subr.bf16.mxu0 0
  %369 = vmatpush2.bf16.msra.mxu0 %v320
  %370 = vmatprep.subr.bf16.mxu0 0
  %371 = vmatpush2.bf16.msra.mxu0 %v319
  %372 = vmatprep.subr.bf16.mxu0 0
  %373 = vmatpush2.bf16.msra.mxu0 %v318
  %374 = vmatprep.mubr.bf16.mxu0 %v183
  %375 = vmatmul.mubr.bf16.gmra.mxu0 %v182
  %v376 = vpop.f32.mrf.mxu0
  %v377 = vadd.f32 %v84, %v376
  %v378 = vpop.f32.mrf.mxu0
  %v379 = vpop.f32.mrf.mxu0
  %v380 = vadd.f32 %v84, %v379
  %v381 = vpop.f32.mrf.mxu0
  %382 = vmatprep.mubr.bf16.mxu0 %v185
  %383 = vmatmul.mubr.bf16.gmra.mxu0 %v184
  %v384 = vpop.f32.mrf.mxu0
  %v385 = vadd.f32 %v84, %v384
  %v386 = vpop.f32.mrf.mxu0
  %v387 = vpop.f32.mrf.mxu0
  %v388 = vadd.f32 %v84, %v387
  %v389 = vpop.f32.mrf.mxu0
  %390 = vmatprep.mubr.bf16.mxu0 %v187
  %391 = vmatmul.mubr.bf16.gmra.mxu0 %v186
  %v392 = vpop.f32.mrf.mxu0
  %v393 = vadd.f32 %v84, %v392
  %v394 = vpop.f32.mrf.mxu0
  %v395 = vpop.f32.mrf.mxu0
  %v396 = vadd.f32 %v84, %v395
  %v397 = vpop.f32.mrf.mxu0
  %398 = vmatprep.mubr.bf16.mxu0 %v189
  %399 = vmatmul.mubr.bf16.gmra.mxu0 %v188
  %v400 = vpop.f32.mrf.mxu0
  %v401 = vadd.f32 %v84, %v400
  %v402 = vpop.f32.mrf.mxu0
  %v403 = vpop.f32.mrf.mxu0
  %v404 = vadd.f32 %v84, %v403
  %v405 = vpop.f32.mrf.mxu0
  %406 = vmatprep.mubr.bf16.mxu0 %v191
  %407 = vmatmul.mubr.bf16.gmra.mxu0 %v190
  %v408 = vpop.f32.mrf.mxu0
  %v409 = vadd.f32 %v84, %v408
  %v410 = vpop.f32.mrf.mxu0
  %v411 = vpop.f32.mrf.mxu0
  %v412 = vadd.f32 %v84, %v411
  %v413 = vpop.f32.mrf.mxu0
  %414 = vmatprep.mubr.bf16.mxu0 %v193
  %415 = vmatmul.mubr.bf16.gmra.mxu0 %v192
  %v416 = vpop.f32.mrf.mxu0
  %v417 = vadd.f32 %v84, %v416
  %v418 = vpop.f32.mrf.mxu0
  %v419 = vpop.f32.mrf.mxu0
  %v420 = vadd.f32 %v84, %v419
  %v421 = vpop.f32.mrf.mxu0
  %422 = vmatprep.mubr.bf16.mxu0 %v195
  %423 = vmatmul.mubr.bf16.gmra.mxu0 %v194
  %v424 = vpop.f32.mrf.mxu0
  %v425 = vadd.f32 %v84, %v424
  %v426 = vpop.f32.mrf.mxu0
  %v427 = vpop.f32.mrf.mxu0
  %v428 = vadd.f32 %v84, %v427
  %v429 = vpop.f32.mrf.mxu0
  %430 = vmatprep.mubr.bf16.mxu0 %v197
  %431 = vmatmul.mubr.bf16.gmra.mxu0 %v196
  %v432 = vpop.f32.mrf.mxu0
  %v433 = vadd.f32 %v84, %v432
  %v434 = vpop.f32.mrf.mxu0
  %v435 = vpop.f32.mrf.mxu0
  %v436 = vadd.f32 %v84, %v435
  %v437 = vpop.f32.mrf.mxu0
  %438 = vmatprep.mubr.bf16.mxu0 %v199
  %439 = vmatmul.mubr.bf16.gmra.mxu0 %v198
  %v440 = vpop.f32.mrf.mxu0
  %v441 = vadd.f32 %v84, %v440
  %v442 = vpop.f32.mrf.mxu0
  %v443 = vpop.f32.mrf.mxu0
  %v444 = vadd.f32 %v84, %v443
  %v445 = vpop.f32.mrf.mxu0
  %446 = vmatprep.mubr.bf16.mxu0 %v201
  %447 = vmatmul.mubr.bf16.gmra.mxu0 %v200
  %v448 = vpop.f32.mrf.mxu0
  %v449 = vadd.f32 %v84, %v448
  %v450 = vpop.f32.mrf.mxu0
  %v451 = vpop.f32.mrf.mxu0
  %v452 = vadd.f32 %v84, %v451
  %v453 = vpop.f32.mrf.mxu0
  %454 = vmatprep.mubr.bf16.mxu0 %v203
  %455 = vmatmul.mubr.bf16.gmra.mxu0 %v202
  %v456 = vpop.f32.mrf.mxu0
  %v457 = vadd.f32 %v84, %v456
  %v458 = vpop.f32.mrf.mxu0
  %v459 = vpop.f32.mrf.mxu0
  %v460 = vadd.f32 %v84, %v459
  %v461 = vpop.f32.mrf.mxu0
  %462 = vmatprep.mubr.bf16.mxu0 %v205
  %463 = vmatmul.mubr.bf16.gmra.mxu0 %v204
  %v464 = vpop.f32.mrf.mxu0
  %v465 = vadd.f32 %v84, %v464
  %v466 = vpop.f32.mrf.mxu0
  %v467 = vpop.f32.mrf.mxu0
  %v468 = vadd.f32 %v84, %v467
  %v469 = vpop.f32.mrf.mxu0
  %470 = vmatprep.mubr.bf16.mxu0 %v207
  %471 = vmatmul.mubr.bf16.gmra.mxu0 %v206
  %v472 = vpop.f32.mrf.mxu0
  %v473 = vadd.f32 %v84, %v472
  %v474 = vpop.f32.mrf.mxu0
  %v475 = vpop.f32.mrf.mxu0
  %v476 = vadd.f32 %v84, %v475
  %v477 = vpop.f32.mrf.mxu0
  %478 = vmatprep.mubr.bf16.mxu0 %v209
  %479 = vmatmul.mubr.bf16.gmra.mxu0 %v208
  %v480 = vpop.f32.mrf.mxu0
  %v481 = vadd.f32 %v84, %v480
  %v482 = vpop.f32.mrf.mxu0
  %v483 = vpop.f32.mrf.mxu0
  %v484 = vadd.f32 %v84, %v483
  %v485 = vpop.f32.mrf.mxu0
  %486 = vmatprep.mubr.bf16.mxu0 %v211
  %487 = vmatmul.mubr.bf16.gmra.mxu0 %v210
  %v488 = vpop.f32.mrf.mxu0
  %v489 = vadd.f32 %v84, %v488
  %v490 = vpop.f32.mrf.mxu0
  %v491 = vpop.f32.mrf.mxu0
  %v492 = vadd.f32 %v84, %v491
  %v493 = vpop.f32.mrf.mxu0
  %494 = vmatprep.mubr.bf16.mxu0 %v213
  %495 = vmatmul.mubr.bf16.gmra.mxu0 %v212
  %v496 = vpop.f32.mrf.mxu0
  %v497 = vadd.f32 %v84, %v496
  %v498 = vpop.f32.mrf.mxu0
  %v499 = vpop.f32.mrf.mxu0
  %v500 = vadd.f32 %v84, %v499
  %v501 = vpop.f32.mrf.mxu0
  %502 = vdwg.mxu0
  %v503 = vmax.f32 %v377, 0.0
  %v504 = vmax.f32 %v380, 0.0
  %v505 = vmax.f32 %v385, 0.0
  %v506 = vmax.f32 %v388, 0.0
  %v507 = vmax.f32 %v393, 0.0
  %v508 = vmax.f32 %v396, 0.0
  %v509 = vmax.f32 %v401, 0.0
  %v510 = vmax.f32 %v404, 0.0
  %v511 = vmax.f32 %v409, 0.0
  %v512 = vmax.f32 %v412, 0.0
  %v513 = vmax.f32 %v417, 0.0
  %v514 = vmax.f32 %v420, 0.0
  %v515 = vmax.f32 %v425, 0.0
  %v516 = vmax.f32 %v428, 0.0
  %v517 = vmax.f32 %v433, 0.0
  %v518 = vmax.f32 %v436, 0.0
  %v519 = vmax.f32 %v441, 0.0
  %v520 = vmax.f32 %v444, 0.0
  %v521 = vmax.f32 %v449, 0.0
  %v522 = vmax.f32 %v452, 0.0
  %v523 = vmax.f32 %v457, 0.0
  %v524 = vmax.f32 %v460, 0.0
  %v525 = vmax.f32 %v465, 0.0
  %v526 = vmax.f32 %v468, 0.0
  %v527 = vmax.f32 %v473, 0.0
  %v528 = vmax.f32 %v476, 0.0
  %v529 = vmax.f32 %v481, 0.0
  %v530 = vmax.f32 %v484, 0.0
  %v531 = vmax.f32 %v489, 0.0
  %v532 = vmax.f32 %v492, 0.0
  %v533 = vmax.f32 %v497, 0.0
  %v534 = vmax.f32 %v500, 0.0
  %535 = vst [vmem:[%s3] sm:$0xff] %v503
  %536 = vst [vmem:[%s3 + $0x8] sm:$0xff] %v504
  %537 = vst [vmem:[%s3 + $0x10] sm:$0xff] %v505
  %538 = vst [vmem:[%s3 + $0x18] sm:$0xff] %v506
  %539 = vst [vmem:[%s3 + $0x20] sm:$0xff] %v507
  %540 = vst [vmem:[%s3 + $0x28] sm:$0xff] %v508
  %541 = vst [vmem:[%s3 + $0x30] sm:$0xff] %v509
  %542 = vst [vmem:[%s3 + $0x38] sm:$0xff] %v510
  %543 = vst [vmem:[%s3 + $0x40] sm:$0xff] %v511
  %544 = vst [vmem:[%s3 + $0x48] sm:$0xff] %v512
  %545 = vst [vmem:[%s3 + $0x50] sm:$0xff] %v513
  %546 = vst [vmem:[%s3 + $0x58] sm:$0xff] %v514
  %547 = vst [vmem:[%s3 + $0x60] sm:$0xff] %v515
  %548 = vst [vmem:[%s3 + $0x68] sm:$0xff] %v516
  %549 = vst [vmem:[%s3 + $0x70] sm:$0xff] %v517
  %550 = vst [vmem:[%s3 + $0x78] sm:$0xff] %v518
  %551 = vst [vmem:[%s3 + $0x80] sm:$0xff] %v519
  %552 = vst [vmem:[%s3 + $0x88] sm:$0xff] %v520
  %553 = vst [vmem:[%s3 + $0x90] sm:$0xff] %v521
  %554 = vst [vmem:[%s3 + $0x98] sm:$0xff] %v522
  %555 = vst [vmem:[%s3 + $0xa0] sm:$0xff] %v523
  %556 = vst [vmem:[%s3 + $0xa8] sm:$0xff] %v524
  %557 = vst [vmem:[%s3 + $0xb0] sm:$0xff] %v525
  %558 = vst [vmem:[%s3 + $0xb8] sm:$0xff] %v526
  %559 = vst [vmem:[%s3 + $0xc0] sm:$0xff] %v527
  %560 = vst [vmem:[%s3 + $0xc8] sm:$0xff] %v528
  %561 = vst [vmem:[%s3 + $0xd0] sm:$0xff] %v529
  %562 = vst [vmem:[%s3 + $0xd8] sm:$0xff] %v530
  %563 = vst [vmem:[%s3 + $0xe0] sm:$0xff] %v531
  %564 = vst [vmem:[%s3 + $0xe8] sm:$0xff] %v532
  %565 = vst [vmem:[%s3 + $0xf0] sm:$0xff] %v533
  %566 = vst [vmem:[%s3 + $0xf8] sm:$0xff] %v534
  // Predicated region
  $region14: #{qlearner_forward.4} parent=0 // pred_check
    _
  $region15: #{qlearner_forward.4} parent=0 // pred_check_branch
    %568 = sbr.rel (0) target = $region17
  $region16: #{qlearner_forward.4} parent=0 // pred_region
    _
  $region17: #{qlearner_forward.4} parent=0 // pred_fallthru
    _
  // Predicated region
  $region18: #{qlearner_forward.4} parent=0 // pred_check
    _
  $region19: #{qlearner_forward.4} parent=0 // pred_check_branch
    %570 = sbr.rel (0) target = $region21
  $region20: #{qlearner_forward.4} parent=0 // pred_region
    _
  $region21: #{qlearner_forward.4} parent=0 // pred_fallthru
    _

// kernel: qlearner_forward.5
$region0: #{qlearner_forward.5}
  #allocation0 [shape = 'u32[]', space=smem, size = 0x4, offset = 0x4, fixed_abs, tag = 'smem constant byte address 0x4 - core index']
  #allocation1 [shape = 'u32[144,128]{1,0:T(1,128)}', space=vmem, size = 0x12000, scoped, tag = 'internal scratch']
  %s0 = inlined_call_operand.vmem [shape: bf16[32,512], index: 0, kind: input, shape index: {}]
  %s1 = inlined_call_operand.vmem [shape: bf16[512,128], index: 1, kind: input, shape index: {}]
  %s2 = inlined_call_operand.vmem [shape: f32[1,128], index: 2, kind: input, shape index: {}]
  %s3 = inlined_call_operand.vmem [shape: f32[32,128], index: 3, kind: output, shape index: {}]
  %s4 = sld [smem:[#allocation0]]
  $region22: #{qlearner_forward.5} parent=0
    _
  %s6 = ssub.s32 1, %s4
  %s7 = scalar_select 0, %s6, %s4
  // Predicated region
  $region2: #{qlearner_forward.5} parent=0 // pred_check
    _
  $region3: #{qlearner_forward.5} parent=0 // pred_check_branch
    %9 = sbr.rel (0) target = $region5
  $region4: #{qlearner_forward.5} parent=0 // pred_region
    _
  $region5: #{qlearner_forward.5} parent=0 // pred_fallthru
    _
  // Predicated region
  $region6: #{qlearner_forward.5} parent=0 // pred_check
    _
  $region7: #{qlearner_forward.5} parent=0 // pred_check_branch
    %11 = sbr.rel (0) target = $region9
  $region8: #{qlearner_forward.5} parent=0 // pred_region
    _
  $region9: #{qlearner_forward.5} parent=0 // pred_fallthru
    _
  // Predicated region
  $region10: #{qlearner_forward.5} parent=0 // pred_check
    _
  $region11: #{qlearner_forward.5} parent=0 // pred_check_branch
    %13 = sbr.rel (0) target = $region13
  $region12: #{qlearner_forward.5} parent=0 // pred_region
    _
  $region13: #{qlearner_forward.5} parent=0 // pred_fallthru
    _
  %v15 = vld [vmem:[%s0] sm:$0xff]
  %v16 = vld [vmem:[%s0 + $0x8] sm:$0xff]
  %v17 = vld [vmem:[%s0 + $0x10] sm:$0xff]
  %v18 = vld [vmem:[%s0 + $0x18] sm:$0xff]
  %v19 = vld [vmem:[%s0 + $0x20] sm:$0xff]
  %v20 = vld [vmem:[%s0 + $0x28] sm:$0xff]
  %v21 = vld [vmem:[%s0 + $0x30] sm:$0xff]
  %v22 = vld [vmem:[%s0 + $0x38] sm:$0xff]
  %v23 = vld [vmem:[%s1] sm:$0xf]
  %v24 = vld [vmem:[%s1 + $0x4] sm:$0xf]
  %v25 = vld [vmem:[%s1 + $0x8] sm:$0xf]
  %v26 = vld [vmem:[%s1 + $0xc] sm:$0xf]
  %v27 = vld [vmem:[%s1 + $0x10] sm:$0xf]
  %v28 = vld [vmem:[%s1 + $0x14] sm:$0xf]
  %v29 = vld [vmem:[%s1 + $0x18] sm:$0xf]
  %v30 = vld [vmem:[%s1 + $0x1c] sm:$0xf]
  %v31 = vld [vmem:[%s1 + $0x20] sm:$0xf]
  %v32 = vld [vmem:[%s1 + $0x24] sm:$0xf]
  %v33 = vld [vmem:[%s1 + $0x28] sm:$0xf]
  %v34 = vld [vmem:[%s1 + $0x2c] sm:$0xf]
  %v35 = vld [vmem:[%s1 + $0x30] sm:$0xf]
  %v36 = vld [vmem:[%s1 + $0x34] sm:$0xf]
  %v37 = vld [vmem:[%s1 + $0x38] sm:$0xf]
  %v38 = vld [vmem:[%s1 + $0x3c] sm:$0xf]
  %v39 = vld [vmem:[%s1 + $0x40] sm:$0xf]
  %v40 = vld [vmem:[%s1 + $0x44] sm:$0xf]
  %v41 = vld [vmem:[%s1 + $0x48] sm:$0xf]
  %v42 = vld [vmem:[%s1 + $0x4c] sm:$0xf]
  %v43 = vld [vmem:[%s1 + $0x50] sm:$0xf]
  %v44 = vld [vmem:[%s1 + $0x54] sm:$0xf]
  %v45 = vld [vmem:[%s1 + $0x58] sm:$0xf]
  %v46 = vld [vmem:[%s1 + $0x5c] sm:$0xf]
  %v47 = vld [vmem:[%s1 + $0x60] sm:$0xf]
  %v48 = vld [vmem:[%s1 + $0x64] sm:$0xf]
  %v49 = vld [vmem:[%s1 + $0x68] sm:$0xf]
  %v50 = vld [vmem:[%s1 + $0x6c] sm:$0xf]
  %v51 = vld [vmem:[%s1 + $0x70] sm:$0xf]
  %v52 = vld [vmem:[%s1 + $0x74] sm:$0xf]
  %v53 = vld [vmem:[%s1 + $0x78] sm:$0xf]
  %v54 = vld [vmem:[%s1 + $0x7c] sm:$0xf]
  %v55 = vld [vmem:[%s1 + $0x80] sm:$0xf]
  %v56 = vld [vmem:[%s1 + $0x84] sm:$0xf]
  %v57 = vld [vmem:[%s1 + $0x88] sm:$0xf]
  %v58 = vld [vmem:[%s1 + $0x8c] sm:$0xf]
  %v59 = vld [vmem:[%s1 + $0x90] sm:$0xf]
  %v60 = vld [vmem:[%s1 + $0x94] sm:$0xf]
  %v61 = vld [vmem:[%s1 + $0x98] sm:$0xf]
  %v62 = vld [vmem:[%s1 + $0x9c] sm:$0xf]
  %v63 = vld [vmem:[%s1 + $0xa0] sm:$0xf]
  %v64 = vld [vmem:[%s1 + $0xa4] sm:$0xf]
  %v65 = vld [vmem:[%s1 + $0xa8] sm:$0xf]
  %v66 = vld [vmem:[%s1 + $0xac] sm:$0xf]
  %v67 = vld [vmem:[%s1 + $0xb0] sm:$0xf]
  %v68 = vld [vmem:[%s1 + $0xb4] sm:$0xf]
  %v69 = vld [vmem:[%s1 + $0xb8] sm:$0xf]
  %v70 = vld [vmem:[%s1 + $0xbc] sm:$0xf]
  %v71 = vld [vmem:[%s1 + $0xc0] sm:$0xf]
  %v72 = vld [vmem:[%s1 + $0xc4] sm:$0xf]
  %v73 = vld [vmem:[%s1 + $0xc8] sm:$0xf]
  %v74 = vld [vmem:[%s1 + $0xcc] sm:$0xf]
  %v75 = vld [vmem:[%s1 + $0xd0] sm:$0xf]
  %v76 = vld [vmem:[%s1 + $0xd4] sm:$0xf]
  %v77 = vld [vmem:[%s1 + $0xd8] sm:$0xf]
  %v78 = vld [vmem:[%s1 + $0xdc] sm:$0xf]
  %v79 = vld [vmem:[%s1 + $0xe0] sm:$0xf]
  %v80 = vld [vmem:[%s1 + $0xe4] sm:$0xf]
  %v81 = vld [vmem:[%s1 + $0xe8] sm:$0xf]
  %v82 = vld [vmem:[%s1 + $0xec] sm:$0xf]
  %v83 = vld [vmem:[%s1 + $0xf0] sm:$0xf]
  %v84 = vld [vmem:[%s1 + $0xf4] sm:$0xf]
  %v85 = vld [vmem:[%s1 + $0xf8] sm:$0xf]
  %v86 = vld [vmem:[%s1 + $0xfc] sm:$0xf]
  %v87 = vld [vmem:[%s2] sm:$0x1]
  %v89 = vlaneseq
  %v90 = vshrl.u32 %v89, 7
  %v91 = vsub.s32 0, %v90
  %v92 = vrot.slane %v87, %v91
  %v102 = vunpack.c.l.b16 %v15
  %v103 = vunpack.c.h.b16 %v15
  %v104 = vunpack.c.l.b16 %v16
  %v105 = vunpack.c.h.b16 %v16
  %v106 = vunpack.c.l.b16 %v17
  %v107 = vunpack.c.h.b16 %v17
  %v108 = vunpack.c.l.b16 %v18
  %v109 = vunpack.c.h.b16 %v18
  %v110 = vunpack.c.l.b16 %v19
  %v111 = vunpack.c.h.b16 %v19
  %v112 = vunpack.c.l.b16 %v20
  %v113 = vunpack.c.h.b16 %v20
  %v114 = vunpack.c.l.b16 %v21
  %v115 = vunpack.c.h.b16 %v21
  %v116 = vunpack.c.l.b16 %v22
  %v117 = vunpack.c.h.b16 %v22
  %v118 = vpack.c.b16 %v106, %v102
  %v119 = vpack.c.b16 %v107, %v103
  %v120 = vpack.c.b16 %v108, %v104
  %v121 = vpack.c.b16 %v109, %v105
  %v122 = vpack.c.b16 %v114, %v110
  %v123 = vpack.c.b16 %v115, %v111
  %v124 = vpack.c.b16 %v116, %v112
  %v125 = vpack.c.b16 %v117, %v113
  %v198 = vunpack.c.l.b16 %v23
  %v199 = vunpack.c.l.b16 %v24
  %v200 = vunpack.c.l.b16 %v25
  %v201 = vunpack.c.l.b16 %v26
  %v202 = vunpack.c.l.b16 %v27
  %v203 = vunpack.c.l.b16 %v28
  %v204 = vunpack.c.l.b16 %v29
  %v205 = vunpack.c.l.b16 %v30
  %v206 = vunpack.c.l.b16 %v31
  %v207 = vunpack.c.l.b16 %v32
  %v208 = vunpack.c.l.b16 %v33
  %v209 = vunpack.c.l.b16 %v34
  %v210 = vunpack.c.l.b16 %v35
  %v211 = vunpack.c.l.b16 %v36
  %v212 = vunpack.c.l.b16 %v37
  %v213 = vunpack.c.l.b16 %v38
  %v214 = vunpack.c.l.b16 %v39
  %v215 = vunpack.c.l.b16 %v40
  %v216 = vunpack.c.l.b16 %v41
  %v217 = vunpack.c.l.b16 %v42
  %v218 = vunpack.c.l.b16 %v43
  %v219 = vunpack.c.l.b16 %v44
  %v220 = vunpack.c.l.b16 %v45
  %v221 = vunpack.c.l.b16 %v46
  %v222 = vunpack.c.l.b16 %v47
  %v223 = vunpack.c.l.b16 %v48
  %v224 = vunpack.c.l.b16 %v49
  %v225 = vunpack.c.l.b16 %v50
  %v226 = vunpack.c.l.b16 %v51
  %v227 = vunpack.c.l.b16 %v52
  %v228 = vunpack.c.l.b16 %v53
  %v229 = vunpack.c.l.b16 %v54
  %v230 = vunpack.c.l.b16 %v55
  %v231 = vunpack.c.l.b16 %v56
  %v232 = vunpack.c.l.b16 %v57
  %v233 = vunpack.c.l.b16 %v58
  %v234 = vunpack.c.l.b16 %v59
  %v235 = vunpack.c.l.b16 %v60
  %v236 = vunpack.c.l.b16 %v61
  %v237 = vunpack.c.l.b16 %v62
  %v238 = vunpack.c.l.b16 %v63
  %v239 = vunpack.c.l.b16 %v64
  %v240 = vunpack.c.l.b16 %v65
  %v241 = vunpack.c.l.b16 %v66
  %v242 = vunpack.c.l.b16 %v67
  %v243 = vunpack.c.l.b16 %v68
  %v244 = vunpack.c.l.b16 %v69
  %v245 = vunpack.c.l.b16 %v70
  %v246 = vunpack.c.l.b16 %v71
  %v247 = vunpack.c.l.b16 %v72
  %v248 = vunpack.c.l.b16 %v73
  %v249 = vunpack.c.l.b16 %v74
  %v250 = vunpack.c.l.b16 %v75
  %v251 = vunpack.c.l.b16 %v76
  %v252 = vunpack.c.l.b16 %v77
  %v253 = vunpack.c.l.b16 %v78
  %v254 = vunpack.c.l.b16 %v79
  %v255 = vunpack.c.l.b16 %v80
  %v256 = vunpack.c.l.b16 %v81
  %v257 = vunpack.c.l.b16 %v82
  %v258 = vunpack.c.l.b16 %v83
  %v259 = vunpack.c.l.b16 %v84
  %v260 = vunpack.c.l.b16 %v85
  %v261 = vunpack.c.l.b16 %v86
  %v262 = vpack.c.b16 %v199, %v198
  %v263 = vpack.c.b16 %v201, %v200
  %v264 = vpack.c.b16 %v203, %v202
  %v265 = vpack.c.b16 %v205, %v204
  %v266 = vpack.c.b16 %v207, %v206
  %v267 = vpack.c.b16 %v209, %v208
  %v268 = vpack.c.b16 %v211, %v210
  %v269 = vpack.c.b16 %v213, %v212
  %v270 = vpack.c.b16 %v215, %v214
  %v271 = vpack.c.b16 %v217, %v216
  %v272 = vpack.c.b16 %v219, %v218
  %v273 = vpack.c.b16 %v221, %v220
  %v274 = vpack.c.b16 %v223, %v222
  %v275 = vpack.c.b16 %v225, %v224
  %v276 = vpack.c.b16 %v227, %v226
  %v277 = vpack.c.b16 %v229, %v228
  %v278 = vpack.c.b16 %v231, %v230
  %v279 = vpack.c.b16 %v233, %v232
  %v280 = vpack.c.b16 %v235, %v234
  %v281 = vpack.c.b16 %v237, %v236
  %v282 = vpack.c.b16 %v239, %v238
  %v283 = vpack.c.b16 %v241, %v240
  %v284 = vpack.c.b16 %v243, %v242
  %v285 = vpack.c.b16 %v245, %v244
  %v286 = vpack.c.b16 %v247, %v246
  %v287 = vpack.c.b16 %v249, %v248
  %v288 = vpack.c.b16 %v251, %v250
  %v289 = vpack.c.b16 %v253, %v252
  %v290 = vpack.c.b16 %v255, %v254
  %v291 = vpack.c.b16 %v257, %v256
  %v292 = vpack.c.b16 %v259, %v258
  %v293 = vpack.c.b16 %v261, %v260
  %326 = vmatprep.subr.bf16.mxu0 0
  %327 = vmatpush1.bf16.msra.mxu0 %v269
  %328 = vmatprep.subr.bf16.mxu0 0
  %329 = vmatpush1.bf16.msra.mxu0 %v268
  %330 = vmatprep.subr.bf16.mxu0 0
  %331 = vmatpush1.bf16.msra.mxu0 %v267
  %332 = vmatprep.subr.bf16.mxu0 0
  %333 = vmatpush1.bf16.msra.mxu0 %v266
  %334 = vmatprep.subr.bf16.mxu0 0
  %335 = vmatpush1.bf16.msra.mxu0 %v265
  %336 = vmatprep.subr.bf16.mxu0 0
  %337 = vmatpush1.bf16.msra.mxu0 %v264
  %338 = vmatprep.subr.bf16.mxu0 0
  %339 = vmatpush1.bf16.msra.mxu0 %v263
  %340 = vmatprep.subr.bf16.mxu0 0
  %341 = vmatpush1.bf16.msra.mxu0 %v262
  %342 = vmatprep.subr.bf16.mxu0 0
  %343 = vmatpush2.bf16.msra.mxu0 %v277
  %344 = vmatprep.subr.bf16.mxu0 0
  %345 = vmatpush2.bf16.msra.mxu0 %v276
  %346 = vmatprep.subr.bf16.mxu0 0
  %347 = vmatpush2.bf16.msra.mxu0 %v275
  %348 = vmatprep.subr.bf16.mxu0 0
  %349 = vmatpush2.bf16.msra.mxu0 %v274
  %350 = vmatprep.subr.bf16.mxu0 0
  %351 = vmatpush2.bf16.msra.mxu0 %v273
  %352 = vmatprep.subr.bf16.mxu0 0
  %353 = vmatpush2.bf16.msra.mxu0 %v272
  %354 = vmatprep.subr.bf16.mxu0 0
  %355 = vmatpush2.bf16.msra.mxu0 %v271
  %356 = vmatprep.subr.bf16.mxu0 0
  %357 = vmatpush2.bf16.msra.mxu0 %v270
  %358 = vmatprep.mubr.bf16.mxu0 %v119
  %359 = vmatmul.mubr.bf16.gmra.mxu0 %v118
  %v360 = vpop.f32.mrf.mxu0
  %v361 = vadd.f32 %v92, %v360
  %v362 = vpop.f32.mrf.mxu0
  %v363 = vpop.f32.mrf.mxu0
  %v364 = vadd.f32 %v92, %v363
  %v365 = vpop.f32.mrf.mxu0
  %366 = vmatprep.mubr.bf16.mxu0 %v123
  %367 = vmatmul.mubr.bf16.gmra.mxu0 %v122
  %v368 = vpop.f32.mrf.mxu0
  %v369 = vadd.f32 %v92, %v368
  %v370 = vpop.f32.mrf.mxu0
  %v371 = vpop.f32.mrf.mxu0
  %v372 = vadd.f32 %v92, %v371
  %v373 = vpop.f32.mrf.mxu0
  %374 = vdwg.mxu0
  %375 = vmatprep.subr.bf16.mxu0 0
  %376 = vmatpush1.bf16.msra.mxu0 %v285
  %377 = vmatprep.subr.bf16.mxu0 0
  %378 = vmatpush1.bf16.msra.mxu0 %v284
  %379 = vmatprep.subr.bf16.mxu0 0
  %380 = vmatpush1.bf16.msra.mxu0 %v283
  %381 = vmatprep.subr.bf16.mxu0 0
  %382 = vmatpush1.bf16.msra.mxu0 %v282
  %383 = vmatprep.subr.bf16.mxu0 0
  %384 = vmatpush1.bf16.msra.mxu0 %v281
  %385 = vmatprep.subr.bf16.mxu0 0
  %386 = vmatpush1.bf16.msra.mxu0 %v280
  %387 = vmatprep.subr.bf16.mxu0 0
  %388 = vmatpush1.bf16.msra.mxu0 %v279
  %389 = vmatprep.subr.bf16.mxu0 0
  %390 = vmatpush1.bf16.msra.mxu0 %v278
  %391 = vmatprep.subr.bf16.mxu0 0
  %392 = vmatpush2.bf16.msra.mxu0 %v293
  %393 = vmatprep.subr.bf16.mxu0 0
  %394 = vmatpush2.bf16.msra.mxu0 %v292
  %395 = vmatprep.subr.bf16.mxu0 0
  %396 = vmatpush2.bf16.msra.mxu0 %v291
  %397 = vmatprep.subr.bf16.mxu0 0
  %398 = vmatpush2.bf16.msra.mxu0 %v290
  %399 = vmatprep.subr.bf16.mxu0 0
  %400 = vmatpush2.bf16.msra.mxu0 %v289
  %401 = vmatprep.subr.bf16.mxu0 0
  %402 = vmatpush2.bf16.msra.mxu0 %v288
  %403 = vmatprep.subr.bf16.mxu0 0
  %404 = vmatpush2.bf16.msra.mxu0 %v287
  %405 = vmatprep.subr.bf16.mxu0 0
  %406 = vmatpush2.bf16.msra.mxu0 %v286
  %407 = vmatprep.mubr.bf16.mxu0 %v121
  %408 = vmatmul.mubr.bf16.gmra.mxu0 %v120
  %v409 = vpop.f32.mrf.mxu0
  %v410 = vadd.f32 %v361, %v409
  %v411 = vpop.f32.mrf.mxu0
  %v412 = vpop.f32.mrf.mxu0
  %v413 = vadd.f32 %v364, %v412
  %v414 = vpop.f32.mrf.mxu0
  %415 = vmatprep.mubr.bf16.mxu0 %v125
  %416 = vmatmul.mubr.bf16.gmra.mxu0 %v124
  %v417 = vpop.f32.mrf.mxu0
  %v418 = vadd.f32 %v369, %v417
  %v419 = vpop.f32.mrf.mxu0
  %v420 = vpop.f32.mrf.mxu0
  %v421 = vadd.f32 %v372, %v420
  %v422 = vpop.f32.mrf.mxu0
  %423 = vdwg.mxu0
  %v424 = vmax.f32 %v410, 0.0
  %v425 = vmax.f32 %v413, 0.0
  %v426 = vmax.f32 %v418, 0.0
  %v427 = vmax.f32 %v421, 0.0
  %428 = vst [vmem:[%s3] sm:$0xff] %v424
  %429 = vst [vmem:[%s3 + $0x8] sm:$0xff] %v425
  %430 = vst [vmem:[%s3 + $0x10] sm:$0xff] %v426
  %431 = vst [vmem:[%s3 + $0x18] sm:$0xff] %v427
  // Predicated region
  $region14: #{qlearner_forward.5} parent=0 // pred_check
    _
  $region15: #{qlearner_forward.5} parent=0 // pred_check_branch
    %433 = sbr.rel (0) target = $region17
  $region16: #{qlearner_forward.5} parent=0 // pred_region
    _
  $region17: #{qlearner_forward.5} parent=0 // pred_fallthru
    _
  // Predicated region
  $region18: #{qlearner_forward.5} parent=0 // pred_check
    _
  $region19: #{qlearner_forward.5} parent=0 // pred_check_branch
    %435 = sbr.rel (0) target = $region21
  $region20: #{qlearner_forward.5} parent=0 // pred_region
    _
  $region21: #{qlearner_forward.5} parent=0 // pred_fallthru
    _

// kernel: qlearner_forward.6
$region0: #{qlearner_forward.6}
  #allocation0 [shape = 'u32[]', space=smem, size = 0x4, offset = 0x4, fixed_abs, tag = 'smem constant byte address 0x4 - core index']
  #allocation1 [shape = 'u32[144,128]{1,0:T(1,128)}', space=vmem, size = 0x12000, scoped, tag = 'internal scratch']
  %s0 = inlined_call_operand.vmem [shape: bf16[16,640], index: 0, kind: input, shape index: {}]
  %s1 = inlined_call_operand.vmem [shape: bf16[640,128], index: 1, kind: input, shape index: {}]
  %s2 = inlined_call_operand.vmem [shape: f32[1,128], index: 2, kind: input, shape index: {}]
  %s3 = inlined_call_operand.vmem [shape: f32[16,128], index: 3, kind: output, shape index: {}]
  %s4 = sld [smem:[#allocation0]]
  $region22: #{qlearner_forward.6} parent=0
    _
  %s6 = ssub.s32 1, %s4
  %s7 = scalar_select 0, %s6, %s4
  // Predicated region
  $region2: #{qlearner_forward.6} parent=0 // pred_check
    _
  $region3: #{qlearner_forward.6} parent=0 // pred_check_branch
    %9 = sbr.rel (0) target = $region5
  $region4: #{qlearner_forward.6} parent=0 // pred_region
    _
  $region5: #{qlearner_forward.6} parent=0 // pred_fallthru
    _
  // Predicated region
  $region6: #{qlearner_forward.6} parent=0 // pred_check
    _
  $region7: #{qlearner_forward.6} parent=0 // pred_check_branch
    %11 = sbr.rel (0) target = $region9
  $region8: #{qlearner_forward.6} parent=0 // pred_region
    _
  $region9: #{qlearner_forward.6} parent=0 // pred_fallthru
    _
  // Predicated region
  $region10: #{qlearner_forward.6} parent=0 // pred_check
    _
  $region11: #{qlearner_forward.6} parent=0 // pred_check_branch
    %13 = sbr.rel (0) target = $region13
  $region12: #{qlearner_forward.6} parent=0 // pred_region
    _
  $region13: #{qlearner_forward.6} parent=0 // pred_fallthru
    _
  %v15 = vld [vmem:[%s0] sm:$0xff]
  %v16 = vld [vmem:[%s0 + $0x8] sm:$0xff]
  %v17 = vld [vmem:[%s0 + $0x10] sm:$0xf]
  %v18 = vld [vmem:[%s0 + $0x14] sm:$0xff]
  %v19 = vld [vmem:[%s0 + $0x1c] sm:$0xff]
  %v20 = vld [vmem:[%s0 + $0x24] sm:$0xf]
  %v21 = vld [vmem:[%s1] sm:$0xf]
  %v22 = vld [vmem:[%s1 + $0x4] sm:$0xf]
  %v23 = vld [vmem:[%s1 + $0x8] sm:$0xf]
  %v24 = vld [vmem:[%s1 + $0xc] sm:$0xf]
  %v25 = vld [vmem:[%s1 + $0x10] sm:$0xf]
  %v26 = vld [vmem:[%s1 + $0x14] sm:$0xf]
  %v27 = vld [vmem:[%s1 + $0x18] sm:$0xf]
  %v28 = vld [vmem:[%s1 + $0x1c] sm:$0xf]
  %v29 = vld [vmem:[%s1 + $0x20] sm:$0xf]
  %v30 = vld [vmem:[%s1 + $0x24] sm:$0xf]
  %v31 = vld [vmem:[%s1 + $0x28] sm:$0xf]
  %v32 = vld [vmem:[%s1 + $0x2c] sm:$0xf]
  %v33 = vld [vmem:[%s1 + $0x30] sm:$0xf]
  %v34 = vld [vmem:[%s1 + $0x34] sm:$0xf]
  %v35 = vld [vmem:[%s1 + $0x38] sm:$0xf]
  %v36 = vld [vmem:[%s1 + $0x3c] sm:$0xf]
  %v37 = vld [vmem:[%s1 + $0x40] sm:$0xf]
  %v38 = vld [vmem:[%s1 + $0x44] sm:$0xf]
  %v39 = vld [vmem:[%s1 + $0x48] sm:$0xf]
  %v40 = vld [vmem:[%s1 + $0x4c] sm:$0xf]
  %v41 = vld [vmem:[%s1 + $0x50] sm:$0xf]
  %v42 = vld [vmem:[%s1 + $0x54] sm:$0xf]
  %v43 = vld [vmem:[%s1 + $0x58] sm:$0xf]
  %v44 = vld [vmem:[%s1 + $0x5c] sm:$0xf]
  %v45 = vld [vmem:[%s1 + $0x60] sm:$0xf]
  %v46 = vld [vmem:[%s1 + $0x64] sm:$0xf]
  %v47 = vld [vmem:[%s1 + $0x68] sm:$0xf]
  %v48 = vld [vmem:[%s1 + $0x6c] sm:$0xf]
  %v49 = vld [vmem:[%s1 + $0x70] sm:$0xf]
  %v50 = vld [vmem:[%s1 + $0x74] sm:$0xf]
  %v51 = vld [vmem:[%s1 + $0x78] sm:$0xf]
  %v52 = vld [vmem:[%s1 + $0x7c] sm:$0xf]
  %v53 = vld [vmem:[%s1 + $0x80] sm:$0xf]
  %v54 = vld [vmem:[%s1 + $0x84] sm:$0xf]
  %v55 = vld [vmem:[%s1 + $0x88] sm:$0xf]
  %v56 = vld [vmem:[%s1 + $0x8c] sm:$0xf]
  %v57 = vld [vmem:[%s1 + $0x90] sm:$0xf]
  %v58 = vld [vmem:[%s1 + $0x94] sm:$0xf]
  %v59 = vld [vmem:[%s1 + $0x98] sm:$0xf]
  %v60 = vld [vmem:[%s1 + $0x9c] sm:$0xf]
  %v61 = vld [vmem:[%s1 + $0xa0] sm:$0xf]
  %v62 = vld [vmem:[%s1 + $0xa4] sm:$0xf]
  %v63 = vld [vmem:[%s1 + $0xa8] sm:$0xf]
  %v64 = vld [vmem:[%s1 + $0xac] sm:$0xf]
  %v65 = vld [vmem:[%s1 + $0xb0] sm:$0xf]
  %v66 = vld [vmem:[%s1 + $0xb4] sm:$0xf]
  %v67 = vld [vmem:[%s1 + $0xb8] sm:$0xf]
  %v68 = vld [vmem:[%s1 + $0xbc] sm:$0xf]
  %v69 = vld [vmem:[%s1 + $0xc0] sm:$0xf]
  %v70 = vld [vmem:[%s1 + $0xc4] sm:$0xf]
  %v71 = vld [vmem:[%s1 + $0xc8] sm:$0xf]
  %v72 = vld [vmem:[%s1 + $0xcc] sm:$0xf]
  %v73 = vld [vmem:[%s1 + $0xd0] sm:$0xf]
  %v74 = vld [vmem:[%s1 + $0xd4] sm:$0xf]
  %v75 = vld [vmem:[%s1 + $0xd8] sm:$0xf]
  %v76 = vld [vmem:[%s1 + $0xdc] sm:$0xf]
  %v77 = vld [vmem:[%s1 + $0xe0] sm:$0xf]
  %v78 = vld [vmem:[%s1 + $0xe4] sm:$0xf]
  %v79 = vld [vmem:[%s1 + $0xe8] sm:$0xf]
  %v80 = vld [vmem:[%s1 + $0xec] sm:$0xf]
  %v81 = vld [vmem:[%s1 + $0xf0] sm:$0xf]
  %v82 = vld [vmem:[%s1 + $0xf4] sm:$0xf]
  %v83 = vld [vmem:[%s1 + $0xf8] sm:$0xf]
  %v84 = vld [vmem:[%s1 + $0xfc] sm:$0xf]
  %v85 = vld [vmem:[%s1 + $0x100] sm:$0xf]
  %v86 = vld [vmem:[%s1 + $0x104] sm:$0xf]
  %v87 = vld [vmem:[%s1 + $0x108] sm:$0xf]
  %v88 = vld [vmem:[%s1 + $0x10c] sm:$0xf]
  %v89 = vld [vmem:[%s1 + $0x110] sm:$0xf]
  %v90 = vld [vmem:[%s1 + $0x114] sm:$0xf]
  %v91 = vld [vmem:[%s1 + $0x118] sm:$0xf]
  %v92 = vld [vmem:[%s1 + $0x11c] sm:$0xf]
  %v93 = vld [vmem:[%s1 + $0x120] sm:$0xf]
  %v94 = vld [vmem:[%s1 + $0x124] sm:$0xf]
  %v95 = vld [vmem:[%s1 + $0x128] sm:$0xf]
  %v96 = vld [vmem:[%s1 + $0x12c] sm:$0xf]
  %v97 = vld [vmem:[%s1 + $0x130] sm:$0xf]
  %v98 = vld [vmem:[%s1 + $0x134] sm:$0xf]
  %v99 = vld [vmem:[%s1 + $0x138] sm:$0xf]
  %v100 = vld [vmem:[%s1 + $0x13c] sm:$0xf]
  %v101 = vld [vmem:[%s2] sm:$0x1]
  %v103 = vlaneseq
  %v104 = vshrl.u32 %v103, 7
  %v105 = vsub.s32 0, %v104
  %v106 = vrot.slane %v101, %v105
  %v114 = vunpack.c.l.b16 %v15
  %v115 = vunpack.c.h.b16 %v15
  %v116 = vunpack.c.l.b16 %v16
  %v117 = vunpack.c.h.b16 %v16
  %v118 = vunpack.c.l.b16 %v17
  %v119 = vunpack.c.l.b16 %v18
  %v120 = vunpack.c.h.b16 %v18
  %v121 = vunpack.c.l.b16 %v19
  %v122 = vunpack.c.h.b16 %v19
  %v123 = vunpack.c.l.b16 %v20
  %v124 = vpack.c.b16 %v119, %v114
  %v125 = vpack.c.b16 %v120, %v115
  %v126 = vpack.c.b16 %v121, %v116
  %v127 = vpack.c.b16 %v122, %v117
  %v128 = vpack.c.b16 %v123, %v118
  %v214 = vunpack.c.l.b16 %v21
  %v215 = vunpack.c.l.b16 %v22
  %v216 = vunpack.c.l.b16 %v23
  %v217 = vunpack.c.l.b16 %v24
  %v218 = vunpack.c.l.b16 %v25
  %v219 = vunpack.c.l.b16 %v26
  %v220 = vunpack.c.l.b16 %v27
  %v221 = vunpack.c.l.b16 %v28
  %v222 = vunpack.c.l.b16 %v29
  %v223 = vunpack.c.l.b16 %v30
  %v224 = vunpack.c.l.b16 %v31
  %v225 = vunpack.c.l.b16 %v32
  %v226 = vunpack.c.l.b16 %v33
  %v227 = vunpack.c.l.b16 %v34
  %v228 = vunpack.c.l.b16 %v35
  %v229 = vunpack.c.l.b16 %v36
  %v230 = vunpack.c.l.b16 %v37
  %v231 = vunpack.c.l.b16 %v38
  %v232 = vunpack.c.l.b16 %v39
  %v233 = vunpack.c.l.b16 %v40
  %v234 = vunpack.c.l.b16 %v41
  %v235 = vunpack.c.l.b16 %v42
  %v236 = vunpack.c.l.b16 %v43
  %v237 = vunpack.c.l.b16 %v44
  %v238 = vunpack.c.l.b16 %v45
  %v239 = vunpack.c.l.b16 %v46
  %v240 = vunpack.c.l.b16 %v47
  %v241 = vunpack.c.l.b16 %v48
  %v242 = vunpack.c.l.b16 %v49
  %v243 = vunpack.c.l.b16 %v50
  %v244 = vunpack.c.l.b16 %v51
  %v245 = vunpack.c.l.b16 %v52
  %v246 = vunpack.c.l.b16 %v53
  %v247 = vunpack.c.l.b16 %v54
  %v248 = vunpack.c.l.b16 %v55
  %v249 = vunpack.c.l.b16 %v56
  %v250 = vunpack.c.l.b16 %v57
  %v251 = vunpack.c.l.b16 %v58
  %v252 = vunpack.c.l.b16 %v59
  %v253 = vunpack.c.l.b16 %v60
  %v254 = vunpack.c.l.b16 %v61
  %v255 = vunpack.c.l.b16 %v62
  %v256 = vunpack.c.l.b16 %v63
  %v257 = vunpack.c.l.b16 %v64
  %v258 = vunpack.c.l.b16 %v65
  %v259 = vunpack.c.l.b16 %v66
  %v260 = vunpack.c.l.b16 %v67
  %v261 = vunpack.c.l.b16 %v68
  %v262 = vunpack.c.l.b16 %v69
  %v263 = vunpack.c.l.b16 %v70
  %v264 = vunpack.c.l.b16 %v71
  %v265 = vunpack.c.l.b16 %v72
  %v266 = vunpack.c.l.b16 %v73
  %v267 = vunpack.c.l.b16 %v74
  %v268 = vunpack.c.l.b16 %v75
  %v269 = vunpack.c.l.b16 %v76
  %v270 = vunpack.c.l.b16 %v77
  %v271 = vunpack.c.l.b16 %v78
  %v272 = vunpack.c.l.b16 %v79
  %v273 = vunpack.c.l.b16 %v80
  %v274 = vunpack.c.l.b16 %v81
  %v275 = vunpack.c.l.b16 %v82
  %v276 = vunpack.c.l.b16 %v83
  %v277 = vunpack.c.l.b16 %v84
  %v278 = vunpack.c.l.b16 %v85
  %v279 = vunpack.c.l.b16 %v86
  %v280 = vunpack.c.l.b16 %v87
  %v281 = vunpack.c.l.b16 %v88
  %v282 = vunpack.c.l.b16 %v89
  %v283 = vunpack.c.l.b16 %v90
  %v284 = vunpack.c.l.b16 %v91
  %v285 = vunpack.c.l.b16 %v92
  %v286 = vunpack.c.l.b16 %v93
  %v287 = vunpack.c.l.b16 %v94
  %v288 = vunpack.c.l.b16 %v95
  %v289 = vunpack.c.l.b16 %v96
  %v290 = vunpack.c.l.b16 %v97
  %v291 = vunpack.c.l.b16 %v98
  %v292 = vunpack.c.l.b16 %v99
  %v293 = vunpack.c.l.b16 %v100
  %v294 = vpack.c.b16 %v215, %v214
  %v295 = vpack.c.b16 %v217, %v216
  %v296 = vpack.c.b16 %v219, %v218
  %v297 = vpack.c.b16 %v221, %v220
  %v298 = vpack.c.b16 %v223, %v222
  %v299 = vpack.c.b16 %v225, %v224
  %v300 = vpack.c.b16 %v227, %v226
  %v301 = vpack.c.b16 %v229, %v228
  %v302 = vpack.c.b16 %v231, %v230
  %v303 = vpack.c.b16 %v233, %v232
  %v304 = vpack.c.b16 %v235, %v234
  %v305 = vpack.c.b16 %v237, %v236
  %v306 = vpack.c.b16 %v239, %v238
  %v307 = vpack.c.b16 %v241, %v240
  %v308 = vpack.c.b16 %v243, %v242
  %v309 = vpack.c.b16 %v245, %v244
  %v310 = vpack.c.b16 %v247, %v246
  %v311 = vpack.c.b16 %v249, %v248
  %v312 = vpack.c.b16 %v251, %v250
  %v313 = vpack.c.b16 %v253, %v252
  %v314 = vpack.c.b16 %v255, %v254
  %v315 = vpack.c.b16 %v257, %v256
  %v316 = vpack.c.b16 %v259, %v258
  %v317 = vpack.c.b16 %v261, %v260
  %v318 = vpack.c.b16 %v263, %v262
  %v319 = vpack.c.b16 %v265, %v264
  %v320 = vpack.c.b16 %v267, %v266
  %v321 = vpack.c.b16 %v269, %v268
  %v322 = vpack.c.b16 %v271, %v270
  %v323 = vpack.c.b16 %v273, %v272
  %v324 = vpack.c.b16 %v275, %v274
  %v325 = vpack.c.b16 %v277, %v276
  %v326 = vpack.c.b16 %v279, %v278
  %v327 = vpack.c.b16 %v281, %v280
  %v328 = vpack.c.b16 %v283, %v282
  %v329 = vpack.c.b16 %v285, %v284
  %v330 = vpack.c.b16 %v287, %v286
  %v331 = vpack.c.b16 %v289, %v288
  %v332 = vpack.c.b16 %v291, %v290
  %v333 = vpack.c.b16 %v293, %v292
  %374 = vmatprep.subr.bf16.mxu0 0
  %375 = vmatpush1.bf16.msra.mxu0 %v301
  %376 = vmatprep.subr.bf16.mxu0 0
  %377 = vmatpush1.bf16.msra.mxu0 %v300
  %378 = vmatprep.subr.bf16.mxu0 0
  %379 = vmatpush1.bf16.msra.mxu0 %v299
  %380 = vmatprep.subr.bf16.mxu0 0
  %381 = vmatpush1.bf16.msra.mxu0 %v298
  %382 = vmatprep.subr.bf16.mxu0 0
  %383 = vmatpush1.bf16.msra.mxu0 %v297
  %384 = vmatprep.subr.bf16.mxu0 0
  %385 = vmatpush1.bf16.msra.mxu0 %v296
  %386 = vmatprep.subr.bf16.mxu0 0
  %387 = vmatpush1.bf16.msra.mxu0 %v295
  %388 = vmatprep.subr.bf16.mxu0 0
  %389 = vmatpush1.bf16.msra.mxu0 %v294
  %390 = vmatprep.subr.bf16.mxu0 0
  %391 = vmatpush2.bf16.msra.mxu0 %v309
  %392 = vmatprep.subr.bf16.mxu0 0
  %393 = vmatpush2.bf16.msra.mxu0 %v308
  %394 = vmatprep.subr.bf16.mxu0 0
  %395 = vmatpush2.bf16.msra.mxu0 %v307
  %396 = vmatprep.subr.bf16.mxu0 0
  %397 = vmatpush2.bf16.msra.mxu0 %v306
  %398 = vmatprep.subr.bf16.mxu0 0
  %399 = vmatpush2.bf16.msra.mxu0 %v305
  %400 = vmatprep.subr.bf16.mxu0 0
  %401 = vmatpush2.bf16.msra.mxu0 %v304
  %402 = vmatprep.subr.bf16.mxu0 0
  %403 = vmatpush2.bf16.msra.mxu0 %v303
  %404 = vmatprep.subr.bf16.mxu0 0
  %405 = vmatpush2.bf16.msra.mxu0 %v302
  %406 = vmatprep.mubr.bf16.mxu0 %v125
  %407 = vmatmul.mubr.bf16.gmra.mxu0 %v124
  %v408 = vpop.f32.mrf.mxu0
  %v409 = vadd.f32 %v106, %v408
  %v410 = vpop.f32.mrf.mxu0
  %v411 = vpop.f32.mrf.mxu0
  %v412 = vadd.f32 %v106, %v411
  %v413 = vpop.f32.mrf.mxu0
  %414 = vdwg.mxu0
  %415 = vmatprep.subr.bf16.mxu0 0
  %416 = vmatpush1.bf16.msra.mxu0 %v317
  %417 = vmatprep.subr.bf16.mxu0 0
  %418 = vmatpush1.bf16.msra.mxu0 %v316
  %419 = vmatprep.subr.bf16.mxu0 0
  %420 = vmatpush1.bf16.msra.mxu0 %v315
  %421 = vmatprep.subr.bf16.mxu0 0
  %422 = vmatpush1.bf16.msra.mxu0 %v314
  %423 = vmatprep.subr.bf16.mxu0 0
  %424 = vmatpush1.bf16.msra.mxu0 %v313
  %425 = vmatprep.subr.bf16.mxu0 0
  %426 = vmatpush1.bf16.msra.mxu0 %v312
  %427 = vmatprep.subr.bf16.mxu0 0
  %428 = vmatpush1.bf16.msra.mxu0 %v311
  %429 = vmatprep.subr.bf16.mxu0 0
  %430 = vmatpush1.bf16.msra.mxu0 %v310
  %431 = vmatprep.subr.bf16.mxu0 0
  %432 = vmatpush2.bf16.msra.mxu0 %v325
  %433 = vmatprep.subr.bf16.mxu0 0
  %434 = vmatpush2.bf16.msra.mxu0 %v324
  %435 = vmatprep.subr.bf16.mxu0 0
  %436 = vmatpush2.bf16.msra.mxu0 %v323
  %437 = vmatprep.subr.bf16.mxu0 0
  %438 = vmatpush2.bf16.msra.mxu0 %v322
  %439 = vmatprep.subr.bf16.mxu0 0
  %440 = vmatpush2.bf16.msra.mxu0 %v321
  %441 = vmatprep.subr.bf16.mxu0 0
  %442 = vmatpush2.bf16.msra.mxu0 %v320
  %443 = vmatprep.subr.bf16.mxu0 0
  %444 = vmatpush2.bf16.msra.mxu0 %v319
  %445 = vmatprep.subr.bf16.mxu0 0
  %446 = vmatpush2.bf16.msra.mxu0 %v318
  %447 = vmatprep.mubr.bf16.mxu0 %v127
  %448 = vmatmul.mubr.bf16.gmra.mxu0 %v126
  %v449 = vpop.f32.mrf.mxu0
  %v450 = vadd.f32 %v409, %v449
  %v451 = vpop.f32.mrf.mxu0
  %v452 = vpop.f32.mrf.mxu0
  %v453 = vadd.f32 %v412, %v452
  %v454 = vpop.f32.mrf.mxu0
  %455 = vdwg.mxu0
  %456 = vmatprep.subr.bf16.mxu0 0
  %457 = vmatpush1.bf16.msra.mxu0 %v333
  %458 = vmatprep.subr.bf16.mxu0 0
  %459 = vmatpush1.bf16.msra.mxu0 %v332
  %460 = vmatprep.subr.bf16.mxu0 0
  %461 = vmatpush1.bf16.msra.mxu0 %v331
  %462 = vmatprep.subr.bf16.mxu0 0
  %463 = vmatpush1.bf16.msra.mxu0 %v330
  %464 = vmatprep.subr.bf16.mxu0 0
  %465 = vmatpush1.bf16.msra.mxu0 %v329
  %466 = vmatprep.subr.bf16.mxu0 0
  %467 = vmatpush1.bf16.msra.mxu0 %v328
  %468 = vmatprep.subr.bf16.mxu0 0
  %469 = vmatpush1.bf16.msra.mxu0 %v327
  %470 = vmatprep.subr.bf16.mxu0 0
  %471 = vmatpush1.bf16.msra.mxu0 %v326
  %472 = vmatprep.subr.bf16.mxu0 0
  %473 = vmatpush2.bf16.msra.mxu0 0
  %474 = vmatprep.subr.bf16.mxu0 0
  %475 = vmatpush2.bf16.msra.mxu0 0
  %476 = vmatprep.subr.bf16.mxu0 0
  %477 = vmatpush2.bf16.msra.mxu0 0
  %478 = vmatprep.subr.bf16.mxu0 0
  %479 = vmatpush2.bf16.msra.mxu0 0
  %480 = vmatprep.subr.bf16.mxu0 0
  %481 = vmatpush2.bf16.msra.mxu0 0
  %482 = vmatprep.subr.bf16.mxu0 0
  %483 = vmatpush2.bf16.msra.mxu0 0
  %484 = vmatprep.subr.bf16.mxu0 0
  %485 = vmatpush2.bf16.msra.mxu0 0
  %486 = vmatprep.subr.bf16.mxu0 0
  %487 = vmatpush2.bf16.msra.mxu0 0
  %488 = vmatprep.mubr.bf16.mxu0 0
  %489 = vmatmul.mubr.bf16.gmra.mxu0 %v128
  %v490 = vpop.f32.mrf.mxu0
  %v491 = vadd.f32 %v450, %v490
  %v492 = vpop.f32.mrf.mxu0
  %v493 = vpop.f32.mrf.mxu0
  %v494 = vadd.f32 %v453, %v493
  %v495 = vpop.f32.mrf.mxu0
  %496 = vdwg.mxu0
  %v497 = vmax.f32 %v491, 0.0
  %v498 = vmax.f32 %v494, 0.0
  %499 = vst [vmem:[%s3] sm:$0xff] %v497
  %500 = vst [vmem:[%s3 + $0x8] sm:$0xff] %v498
  // Predicated region
  $region14: #{qlearner_forward.6} parent=0 // pred_check
    _
  $region15: #{qlearner_forward.6} parent=0 // pred_check_branch
    %502 = sbr.rel (0) target = $region17
  $region16: #{qlearner_forward.6} parent=0 // pred_region
    _
  $region17: #{qlearner_forward.6} parent=0 // pred_fallthru
    _
  // Predicated region
  $region18: #{qlearner_forward.6} parent=0 // pred_check
    _
  $region19: #{qlearner_forward.6} parent=0 // pred_check_branch
    %504 = sbr.rel (0) target = $region21
  $region20: #{qlearner_forward.6} parent=0 // pred_region
    _
  $region21: #{qlearner_forward.6} parent=0 // pred_fallthru
    _

// kernel: qlearner_forward.7
$region0: #{qlearner_forward.7}
  #allocation0 [shape = 'u32[]', space=smem, size = 0x4, offset = 0x4, fixed_abs, tag = 'smem constant byte address 0x4 - core index']
  #allocation1 [shape = 'u32[144,128]{1,0:T(1,128)}', space=vmem, size = 0x12000, scoped, tag = 'internal scratch']
  %s0 = inlined_call_operand.vmem [shape: bf16[16,256], index: 0, kind: input, shape index: {}]
  %s1 = inlined_call_operand.vmem [shape: bf16[256,512], index: 1, kind: input, shape index: {}]
  %s2 = inlined_call_operand.vmem [shape: f32[1,512], index: 2, kind: input, shape index: {}]
  %s3 = inlined_call_operand.vmem [shape: bf16[512,128], index: 3, kind: input, shape index: {}]
  %s4 = inlined_call_operand.vmem [shape: f32[1,128], index: 4, kind: input, shape index: {}]
  %s5 = inlined_call_operand.vmem [shape: f32[16,128], index: 5, kind: output, shape index: {}]
  %s6 = sld [smem:[#allocation0]]
  $region30: #{qlearner_forward.7} parent=0
    _
  %s8 = ssub.s32 1, %s6
  %s9 = scalar_select 0, %s8, %s6
  // Predicated region
  $region2: #{qlearner_forward.7} parent=0 // pred_check
    _
  $region3: #{qlearner_forward.7} parent=0 // pred_check_branch
    %11 = sbr.rel (0) target = $region5
  $region4: #{qlearner_forward.7} parent=0 // pred_region
    _
  $region5: #{qlearner_forward.7} parent=0 // pred_fallthru
    _
  // Predicated region
  $region6: #{qlearner_forward.7} parent=0 // pred_check
    _
  $region7: #{qlearner_forward.7} parent=0 // pred_check_branch
    %13 = sbr.rel (0) target = $region9
  $region8: #{qlearner_forward.7} parent=0 // pred_region
    _
  $region9: #{qlearner_forward.7} parent=0 // pred_fallthru
    _
  // Predicated region
  $region10: #{qlearner_forward.7} parent=0 // pred_check
    _
  $region11: #{qlearner_forward.7} parent=0 // pred_check_branch
    %15 = sbr.rel (0) target = $region13
  $region12: #{qlearner_forward.7} parent=0 // pred_region
    _
  $region13: #{qlearner_forward.7} parent=0 // pred_fallthru
    _
  // Predicated region
  $region14: #{qlearner_forward.7} parent=0 // pred_check
    _
  $region15: #{qlearner_forward.7} parent=0 // pred_check_branch
    %17 = sbr.rel (0) target = $region17
  $region16: #{qlearner_forward.7} parent=0 // pred_region
    _
  $region17: #{qlearner_forward.7} parent=0 // pred_fallthru
    _
  // Predicated region
  $region18: #{qlearner_forward.7} parent=0 // pred_check
    _
  $region19: #{qlearner_forward.7} parent=0 // pred_check_branch
    %19 = sbr.rel (0) target = $region21
  $region20: #{qlearner_forward.7} parent=0 // pred_region
    _
  $region21: #{qlearner_forward.7} parent=0 // pred_fallthru
    _
  %v21 = vld [vmem:[%s0] sm:$0xff]
  %v22 = vld [vmem:[%s0 + $0x8] sm:$0xff]
  %v23 = vld [vmem:[%s1] sm:$0xff]
  %v24 = vld [vmem:[%s1 + $0x8] sm:$0xff]
  %v25 = vld [vmem:[%s1 + $0x10] sm:$0xff]
  %v26 = vld [vmem:[%s1 + $0x18] sm:$0xff]
  %v27 = vld [vmem:[%s1 + $0x20] sm:$0xff]
  %v28 = vld [vmem:[%s1 + $0x28] sm:$0xff]
  %v29 = vld [vmem:[%s1 + $0x30] sm:$0xff]
  %v30 = vld [vmem:[%s1 + $0x38] sm:$0xff]
  %v31 = vld [vmem:[%s1 + $0x40] sm:$0xff]
  %v32 = vld [vmem:[%s1 + $0x48] sm:$0xff]
  %v33 = vld [vmem:[%s1 + $0x50] sm:$0xff]
  %v34 = vld [vmem:[%s1 + $0x58] sm:$0xff]
  %v35 = vld [vmem:[%s1 + $0x60] sm:$0xff]
  %v36 = vld [vmem:[%s1 + $0x68] sm:$0xff]
  %v37 = vld [vmem:[%s1 + $0x70] sm:$0xff]
  %v38 = vld [vmem:[%s1 + $0x78] sm:$0xff]
  %v39 = vld [vmem:[%s1 + $0x80] sm:$0xff]
  %v40 = vld [vmem:[%s1 + $0x88] sm:$0xff]
  %v41 = vld [vmem:[%s1 + $0x90] sm:$0xff]
  %v42 = vld [vmem:[%s1 + $0x98] sm:$0xff]
  %v43 = vld [vmem:[%s1 + $0xa0] sm:$0xff]
  %v44 = vld [vmem:[%s1 + $0xa8] sm:$0xff]
  %v45 = vld [vmem:[%s1 + $0xb0] sm:$0xff]
  %v46 = vld [vmem:[%s1 + $0xb8] sm:$0xff]
  %v47 = vld [vmem:[%s1 + $0xc0] sm:$0xff]
  %v48 = vld [vmem:[%s1 + $0xc8] sm:$0xff]
  %v49 = vld [vmem:[%s1 + $0xd0] sm:$0xff]
  %v50 = vld [vmem:[%s1 + $0xd8] sm:$0xff]
  %v51 = vld [vmem:[%s1 + $0xe0] sm:$0xff]
  %v52 = vld [vmem:[%s1 + $0xe8] sm:$0xff]
  %v53 = vld [vmem:[%s1 + $0xf0] sm:$0xff]
  %v54 = vld [vmem:[%s1 + $0xf8] sm:$0xff]
  %v55 = vld [vmem:[%s1 + $0x100] sm:$0xff]
  %v56 = vld [vmem:[%s1 + $0x108] sm:$0xff]
  %v57 = vld [vmem:[%s1 + $0x110] sm:$0xff]
  %v58 = vld [vmem:[%s1 + $0x118] sm:$0xff]
  %v59 = vld [vmem:[%s1 + $0x120] sm:$0xff]
  %v60 = vld [vmem:[%s1 + $0x128] sm:$0xff]
  %v61 = vld [vmem:[%s1 + $0x130] sm:$0xff]
  %v62 = vld [vmem:[%s1 + $0x138] sm:$0xff]
  %v63 = vld [vmem:[%s1 + $0x140] sm:$0xff]
  %v64 = vld [vmem:[%s1 + $0x148] sm:$0xff]
  %v65 = vld [vmem:[%s1 + $0x150] sm:$0xff]
  %v66 = vld [vmem:[%s1 + $0x158] sm:$0xff]
  %v67 = vld [vmem:[%s1 + $0x160] sm:$0xff]
  %v68 = vld [vmem:[%s1 + $0x168] sm:$0xff]
  %v69 = vld [vmem:[%s1 + $0x170] sm:$0xff]
  %v70 = vld [vmem:[%s1 + $0x178] sm:$0xff]
  %v71 = vld [vmem:[%s1 + $0x180] sm:$0xff]
  %v72 = vld [vmem:[%s1 + $0x188] sm:$0xff]
  %v73 = vld [vmem:[%s1 + $0x190] sm:$0xff]
  %v74 = vld [vmem:[%s1 + $0x198] sm:$0xff]
  %v75 = vld [vmem:[%s1 + $0x1a0] sm:$0xff]
  %v76 = vld [vmem:[%s1 + $0x1a8] sm:$0xff]
  %v77 = vld [vmem:[%s1 + $0x1b0] sm:$0xff]
  %v78 = vld [vmem:[%s1 + $0x1b8] sm:$0xff]
  %v79 = vld [vmem:[%s1 + $0x1c0] sm:$0xff]
  %v80 = vld [vmem:[%s1 + $0x1c8] sm:$0xff]
  %v81 = vld [vmem:[%s1 + $0x1d0] sm:$0xff]
  %v82 = vld [vmem:[%s1 + $0x1d8] sm:$0xff]
  %v83 = vld [vmem:[%s1 + $0x1e0] sm:$0xff]
  %v84 = vld [vmem:[%s1 + $0x1e8] sm:$0xff]
  %v85 = vld [vmem:[%s1 + $0x1f0] sm:$0xff]
  %v86 = vld [vmem:[%s1 + $0x1f8] sm:$0xff]
  %v87 = vld [vmem:[%s2] sm:$0xf]
  %v89 = vlaneseq
  %v90 = vshrl.u32 %v89, 7
  %v91 = vsub.s32 0, %v90
  %v92 = vrot.slane %v87, %v91
  %v93 = vlaneseq
  %v94 = vshrl.u32 %v93, 7
  %v95 = vsub.s32 1, %v94
  %v96 = vrot.slane %v87, %v95
  %v97 = vlaneseq
  %v98 = vshrl.u32 %v97, 7
  %v99 = vsub.s32 2, %v98
  %v100 = vrot.slane %v87, %v99
  %v101 = vlaneseq
  %v102 = vshrl.u32 %v101, 7
  %v103 = vsub.s32 3, %v102
  %v104 = vrot.slane %v87, %v103
  %v111 = vunpack.c.l.b16 %v21
  %v112 = vunpack.c.h.b16 %v21
  %v113 = vunpack.c.l.b16 %v22
  %v114 = vunpack.c.h.b16 %v22
  %v115 = vpack.c.b16 %v113, %v111
  %v116 = vpack.c.b16 %v114, %v112
  %v183 = vunpack.c.l.b16 %v23
  %v184 = vunpack.c.h.b16 %v23
  %v185 = vunpack.c.l.b16 %v24
  %v186 = vunpack.c.h.b16 %v24
  %v187 = vunpack.c.l.b16 %v25
  %v188 = vunpack.c.h.b16 %v25
  %v189 = vunpack.c.l.b16 %v26
  %v190 = vunpack.c.h.b16 %v26
  %v191 = vunpack.c.l.b16 %v27
  %v192 = vunpack.c.h.b16 %v27
  %v193 = vunpack.c.l.b16 %v28
  %v194 = vunpack.c.h.b16 %v28
  %v195 = vunpack.c.l.b16 %v29
  %v196 = vunpack.c.h.b16 %v29
  %v197 = vunpack.c.l.b16 %v30
  %v198 = vunpack.c.h.b16 %v30
  %v199 = vunpack.c.l.b16 %v31
  %v200 = vunpack.c.h.b16 %v31
  %v201 = vunpack.c.l.b16 %v32
  %v202 = vunpack.c.h.b16 %v32
  %v203 = vunpack.c.l.b16 %v33
  %v204 = vunpack.c.h.b16 %v33
  %v205 = vunpack.c.l.b16 %v34
  %v206 = vunpack.c.h.b16 %v34
  %v207 = vunpack.c.l.b16 %v35
  %v208 = vunpack.c.h.b16 %v35
  %v209 = vunpack.c.l.b16 %v36
  %v210 = vunpack.c.h.b16 %v36
  %v211 = vunpack.c.l.b16 %v37
  %v212 = vunpack.c.h.b16 %v37
  %v213 = vunpack.c.l.b16 %v38
  %v214 = vunpack.c.h.b16 %v38
  %v215 = vunpack.c.l.b16 %v39
  %v216 = vunpack.c.h.b16 %v39
  %v217 = vunpack.c.l.b16 %v40
  %v218 = vunpack.c.h.b16 %v40
  %v219 = vunpack.c.l.b16 %v41
  %v220 = vunpack.c.h.b16 %v41
  %v221 = vunpack.c.l.b16 %v42
  %v222 = vunpack.c.h.b16 %v42
  %v223 = vunpack.c.l.b16 %v43
  %v224 = vunpack.c.h.b16 %v43
  %v225 = vunpack.c.l.b16 %v44
  %v226 = vunpack.c.h.b16 %v44
  %v227 = vunpack.c.l.b16 %v45
  %v228 = vunpack.c.h.b16 %v45
  %v229 = vunpack.c.l.b16 %v46
  %v230 = vunpack.c.h.b16 %v46
  %v231 = vunpack.c.l.b16 %v47
  %v232 = vunpack.c.h.b16 %v47
  %v233 = vunpack.c.l.b16 %v48
  %v234 = vunpack.c.h.b16 %v48
  %v235 = vunpack.c.l.b16 %v49
  %v236 = vunpack.c.h.b16 %v49
  %v237 = vunpack.c.l.b16 %v50
  %v238 = vunpack.c.h.b16 %v50
  %v239 = vunpack.c.l.b16 %v51
  %v240 = vunpack.c.h.b16 %v51
  %v241 = vunpack.c.l.b16 %v52
  %v242 = vunpack.c.h.b16 %v52
  %v243 = vunpack.c.l.b16 %v53
  %v244 = vunpack.c.h.b16 %v53
  %v245 = vunpack.c.l.b16 %v54
  %v246 = vunpack.c.h.b16 %v54
  %v247 = vunpack.c.l.b16 %v55
  %v248 = vunpack.c.h.b16 %v55
  %v249 = vunpack.c.l.b16 %v56
  %v250 = vunpack.c.h.b16 %v56
  %v251 = vunpack.c.l.b16 %v57
  %v252 = vunpack.c.h.b16 %v57
  %v253 = vunpack.c.l.b16 %v58
  %v254 = vunpack.c.h.b16 %v58
  %v255 = vunpack.c.l.b16 %v59
  %v256 = vunpack.c.h.b16 %v59
  %v257 = vunpack.c.l.b16 %v60
  %v258 = vunpack.c.h.b16 %v60
  %v259 = vunpack.c.l.b16 %v61
  %v260 = vunpack.c.h.b16 %v61
  %v261 = vunpack.c.l.b16 %v62
  %v262 = vunpack.c.h.b16 %v62
  %v263 = vunpack.c.l.b16 %v63
  %v264 = vunpack.c.h.b16 %v63
  %v265 = vunpack.c.l.b16 %v64
  %v266 = vunpack.c.h.b16 %v64
  %v267 = vunpack.c.l.b16 %v65
  %v268 = vunpack.c.h.b16 %v65
  %v269 = vunpack.c.l.b16 %v66
  %v270 = vunpack.c.h.b16 %v66
  %v271 = vunpack.c.l.b16 %v67
  %v272 = vunpack.c.h.b16 %v67
  %v273 = vunpack.c.l.b16 %v68
  %v274 = vunpack.c.h.b16 %v68
  %v275 = vunpack.c.l.b16 %v69
  %v276 = vunpack.c.h.b16 %v69
  %v277 = vunpack.c.l.b16 %v70
  %v278 = vunpack.c.h.b16 %v70
  %v279 = vunpack.c.l.b16 %v71
  %v280 = vunpack.c.h.b16 %v71
  %v281 = vunpack.c.l.b16 %v72
  %v282 = vunpack.c.h.b16 %v72
  %v283 = vunpack.c.l.b16 %v73
  %v284 = vunpack.c.h.b16 %v73
  %v285 = vunpack.c.l.b16 %v74
  %v286 = vunpack.c.h.b16 %v74
  %v287 = vunpack.c.l.b16 %v75
  %v288 = vunpack.c.h.b16 %v75
  %v289 = vunpack.c.l.b16 %v76
  %v290 = vunpack.c.h.b16 %v76
  %v291 = vunpack.c.l.b16 %v77
  %v292 = vunpack.c.h.b16 %v77
  %v293 = vunpack.c.l.b16 %v78
  %v294 = vunpack.c.h.b16 %v78
  %v295 = vunpack.c.l.b16 %v79
  %v296 = vunpack.c.h.b16 %v79
  %v297 = vunpack.c.l.b16 %v80
  %v298 = vunpack.c.h.b16 %v80
  %v299 = vunpack.c.l.b16 %v81
  %v300 = vunpack.c.h.b16 %v81
  %v301 = vunpack.c.l.b16 %v82
  %v302 = vunpack.c.h.b16 %v82
  %v303 = vunpack.c.l.b16 %v83
  %v304 = vunpack.c.h.b16 %v83
  %v305 = vunpack.c.l.b16 %v84
  %v306 = vunpack.c.h.b16 %v84
  %v307 = vunpack.c.l.b16 %v85
  %v308 = vunpack.c.h.b16 %v85
  %v309 = vunpack.c.l.b16 %v86
  %v310 = vunpack.c.h.b16 %v86
  %v311 = vpack.c.b16 %v187, %v183
  %v312 = vpack.c.b16 %v188, %v184
  %v313 = vpack.c.b16 %v189, %v185
  %v314 = vpack.c.b16 %v190, %v186
  %v315 = vpack.c.b16 %v195, %v191
  %v316 = vpack.c.b16 %v196, %v192
  %v317 = vpack.c.b16 %v197, %v193
  %v318 = vpack.c.b16 %v198, %v194
  %v319 = vpack.c.b16 %v203, %v199
  %v320 = vpack.c.b16 %v204, %v200
  %v321 = vpack.c.b16 %v205, %v201
  %v322 = vpack.c.b16 %v206, %v202
  %v323 = vpack.c.b16 %v211, %v207
  %v324 = vpack.c.b16 %v212, %v208
  %v325 = vpack.c.b16 %v213, %v209
  %v326 = vpack.c.b16 %v214, %v210
  %v327 = vpack.c.b16 %v219, %v215
  %v328 = vpack.c.b16 %v220, %v216
  %v329 = vpack.c.b16 %v221, %v217
  %v330 = vpack.c.b16 %v222, %v218
  %v331 = vpack.c.b16 %v227, %v223
  %v332 = vpack.c.b16 %v228, %v224
  %v333 = vpack.c.b16 %v229, %v225
  %v334 = vpack.c.b16 %v230, %v226
  %v335 = vpack.c.b16 %v235, %v231
  %v336 = vpack.c.b16 %v236, %v232
  %v337 = vpack.c.b16 %v237, %v233
  %v338 = vpack.c.b16 %v238, %v234
  %v339 = vpack.c.b16 %v243, %v239
  %v340 = vpack.c.b16 %v244, %v240
  %v341 = vpack.c.b16 %v245, %v241
  %v342 = vpack.c.b16 %v246, %v242
  %v343 = vpack.c.b16 %v251, %v247
  %v344 = vpack.c.b16 %v252, %v248
  %v345 = vpack.c.b16 %v253, %v249
  %v346 = vpack.c.b16 %v254, %v250
  %v347 = vpack.c.b16 %v259, %v255
  %v348 = vpack.c.b16 %v260, %v256
  %v349 = vpack.c.b16 %v261, %v257
  %v350 = vpack.c.b16 %v262, %v258
  %v351 = vpack.c.b16 %v267, %v263
  %v352 = vpack.c.b16 %v268, %v264
  %v353 = vpack.c.b16 %v269, %v265
  %v354 = vpack.c.b16 %v270, %v266
  %v355 = vpack.c.b16 %v275, %v271
  %v356 = vpack.c.b16 %v276, %v272
  %v357 = vpack.c.b16 %v277, %v273
  %v358 = vpack.c.b16 %v278, %v274
  %v359 = vpack.c.b16 %v283, %v279
  %v360 = vpack.c.b16 %v284, %v280
  %v361 = vpack.c.b16 %v285, %v281
  %v362 = vpack.c.b16 %v286, %v282
  %v363 = vpack.c.b16 %v291, %v287
  %v364 = vpack.c.b16 %v292, %v288
  %v365 = vpack.c.b16 %v293, %v289
  %v366 = vpack.c.b16 %v294, %v290
  %v367 = vpack.c.b16 %v299, %v295
  %v368 = vpack.c.b16 %v300, %v296
  %v369 = vpack.c.b16 %v301, %v297
  %v370 = vpack.c.b16 %v302, %v298
  %v371 = vpack.c.b16 %v307, %v303
  %v372 = vpack.c.b16 %v308, %v304
  %v373 = vpack.c.b16 %v309, %v305
  %v374 = vpack.c.b16 %v310, %v306
  %439 = vmatprep.subr.bf16.mxu0 %v340
  %440 = vmatpush1.bf16.msra.mxu0 %v339
  %441 = vmatprep.subr.bf16.mxu0 %v336
  %442 = vmatpush1.bf16.msra.mxu0 %v335
  %443 = vmatprep.subr.bf16.mxu0 %v332
  %444 = vmatpush1.bf16.msra.mxu0 %v331
  %445 = vmatprep.subr.bf16.mxu0 %v328
  %446 = vmatpush1.bf16.msra.mxu0 %v327
  %447 = vmatprep.subr.bf16.mxu0 %v324
  %448 = vmatpush1.bf16.msra.mxu0 %v323
  %449 = vmatprep.subr.bf16.mxu0 %v320
  %450 = vmatpush1.bf16.msra.mxu0 %v319
  %451 = vmatprep.subr.bf16.mxu0 %v316
  %452 = vmatpush1.bf16.msra.mxu0 %v315
  %453 = vmatprep.subr.bf16.mxu0 %v312
  %454 = vmatpush1.bf16.msra.mxu0 %v311
  %455 = vmatprep.subr.bf16.mxu0 %v372
  %456 = vmatpush2.bf16.msra.mxu0 %v371
  %457 = vmatprep.subr.bf16.mxu0 %v368
  %458 = vmatpush2.bf16.msra.mxu0 %v367
  %459 = vmatprep.subr.bf16.mxu0 %v364
  %460 = vmatpush2.bf16.msra.mxu0 %v363
  %461 = vmatprep.subr.bf16.mxu0 %v360
  %462 = vmatpush2.bf16.msra.mxu0 %v359
  %463 = vmatprep.subr.bf16.mxu0 %v356
  %464 = vmatpush2.bf16.msra.mxu0 %v355
  %465 = vmatprep.subr.bf16.mxu0 %v352
  %466 = vmatpush2.bf16.msra.mxu0 %v351
  %467 = vmatprep.subr.bf16.mxu0 %v348
  %468 = vmatpush2.bf16.msra.mxu0 %v347
  %469 = vmatprep.subr.bf16.mxu0 %v344
  %470 = vmatpush2.bf16.msra.mxu0 %v343
  %471 = vmatprep.mubr.bf16.mxu0 %v116
  %472 = vmatmul.mubr.bf16.gmra.mxu0 %v115
  %v473 = vpop.f32.mrf.mxu0
  %v474 = vadd.f32 %v92, %v473
  %v475 = vpop.f32.mrf.mxu0
  %v476 = vadd.f32 %v96, %v475
  %v477 = vpop.f32.mrf.mxu0
  %v478 = vadd.f32 %v92, %v477
  %v479 = vpop.f32.mrf.mxu0
  %v480 = vadd.f32 %v96, %v479
  %481 = vdwg.mxu0
  %482 = vmatprep.subr.bf16.mxu0 %v342
  %483 = vmatpush1.bf16.msra.mxu0 %v341
  %484 = vmatprep.subr.bf16.mxu0 %v338
  %485 = vmatpush1.bf16.msra.mxu0 %v337
  %486 = vmatprep.subr.bf16.mxu0 %v334
  %487 = vmatpush1.bf16.msra.mxu0 %v333
  %488 = vmatprep.subr.bf16.mxu0 %v330
  %489 = vmatpush1.bf16.msra.mxu0 %v329
  %490 = vmatprep.subr.bf16.mxu0 %v326
  %491 = vmatpush1.bf16.msra.mxu0 %v325
  %492 = vmatprep.subr.bf16.mxu0 %v322
  %493 = vmatpush1.bf16.msra.mxu0 %v321
  %494 = vmatprep.subr.bf16.mxu0 %v318
  %495 = vmatpush1.bf16.msra.mxu0 %v317
  %496 = vmatprep.subr.bf16.mxu0 %v314
  %497 = vmatpush1.bf16.msra.mxu0 %v313
  %498 = vmatprep.subr.bf16.mxu0 %v374
  %499 = vmatpush2.bf16.msra.mxu0 %v373
  %500 = vmatprep.subr.bf16.mxu0 %v370
  %501 = vmatpush2.bf16.msra.mxu0 %v369
  %502 = vmatprep.subr.bf16.mxu0 %v366
  %503 = vmatpush2.bf16.msra.mxu0 %v365
  %504 = vmatprep.subr.bf16.mxu0 %v362
  %505 = vmatpush2.bf16.msra.mxu0 %v361
  %506 = vmatprep.subr.bf16.mxu0 %v358
  %507 = vmatpush2.bf16.msra.mxu0 %v357
  %508 = vmatprep.subr.bf16.mxu0 %v354
  %509 = vmatpush2.bf16.msra.mxu0 %v353
  %510 = vmatprep.subr.bf16.mxu0 %v350
  %511 = vmatpush2.bf16.msra.mxu0 %v349
  %512 = vmatprep.subr.bf16.mxu0 %v346
  %513 = vmatpush2.bf16.msra.mxu0 %v345
  %514 = vmatprep.mubr.bf16.mxu0 %v116
  %515 = vmatmul.mubr.bf16.gmra.mxu0 %v115
  %v516 = vpop.f32.mrf.mxu0
  %v517 = vadd.f32 %v100, %v516
  %v518 = vpop.f32.mrf.mxu0
  %v519 = vadd.f32 %v104, %v518
  %v520 = vpop.f32.mrf.mxu0
  %v521 = vadd.f32 %v100, %v520
  %v522 = vpop.f32.mrf.mxu0
  %v523 = vadd.f32 %v104, %v522
  %524 = vdwg.mxu0
  %v525 = vmax.f32 %v474, 0.0
  %v526 = vmax.f32 %v476, 0.0
  %v527 = vmax.f32 %v517, 0.0
  %v528 = vmax.f32 %v519, 0.0
  %v529 = vmax.f32 %v478, 0.0
  %v530 = vmax.f32 %v480, 0.0
  %v531 = vmax.f32 %v521, 0.0
  %v532 = vmax.f32 %v523, 0.0
  %v533 = vpack.c.bf16 %v529, %v525
  %v534 = vpack.c.bf16 %v530, %v526
  %v535 = vpack.c.bf16 %v531, %v527
  %v536 = vpack.c.bf16 %v532, %v528
  %v537 = vld [vmem:[%s3] sm:$0xf]
  %v538 = vld [vmem:[%s3 + $0x4] sm:$0xf]
  %v539 = vld [vmem:[%s3 + $0x8] sm:$0xf]
  %v540 = vld [vmem:[%s3 + $0xc] sm:$0xf]
  %v541 = vld [vmem:[%s3 + $0x10] sm:$0xf]
  %v542 = vld [vmem:[%s3 + $0x14] sm:$0xf]
  %v543 = vld [vmem:[%s3 + $0x18] sm:$0xf]
  %v544 = vld [vmem:[%s3 + $0x1c] sm:$0xf]
  %v545 = vld [vmem:[%s3 + $0x20] sm:$0xf]
  %v546 = vld [vmem:[%s3 + $0x24] sm:$0xf]
  %v547 = vld [vmem:[%s3 + $0x28] sm:$0xf]
  %v548 = vld [vmem:[%s3 + $0x2c] sm:$0xf]
  %v549 = vld [vmem:[%s3 + $0x30] sm:$0xf]
  %v550 = vld [vmem:[%s3 + $0x34] sm:$0xf]
  %v551 = vld [vmem:[%s3 + $0x38] sm:$0xf]
  %v552 = vld [vmem:[%s3 + $0x3c] sm:$0xf]
  %v553 = vld [vmem:[%s3 + $0x40] sm:$0xf]
  %v554 = vld [vmem:[%s3 + $0x44] sm:$0xf]
  %v555 = vld [vmem:[%s3 + $0x48] sm:$0xf]
  %v556 = vld [vmem:[%s3 + $0x4c] sm:$0xf]
  %v557 = vld [vmem:[%s3 + $0x50] sm:$0xf]
  %v558 = vld [vmem:[%s3 + $0x54] sm:$0xf]
  %v559 = vld [vmem:[%s3 + $0x58] sm:$0xf]
  %v560 = vld [vmem:[%s3 + $0x5c] sm:$0xf]
  %v561 = vld [vmem:[%s3 + $0x60] sm:$0xf]
  %v562 = vld [vmem:[%s3 + $0x64] sm:$0xf]
  %v563 = vld [vmem:[%s3 + $0x68] sm:$0xf]
  %v564 = vld [vmem:[%s3 + $0x6c] sm:$0xf]
  %v565 = vld [vmem:[%s3 + $0x70] sm:$0xf]
  %v566 = vld [vmem:[%s3 + $0x74] sm:$0xf]
  %v567 = vld [vmem:[%s3 + $0x78] sm:$0xf]
  %v568 = vld [vmem:[%s3 + $0x7c] sm:$0xf]
  %v569 = vld [vmem:[%s3 + $0x80] sm:$0xf]
  %v570 = vld [vmem:[%s3 + $0x84] sm:$0xf]
  %v571 = vld [vmem:[%s3 + $0x88] sm:$0xf]
  %v572 = vld [vmem:[%s3 + $0x8c] sm:$0xf]
  %v573 = vld [vmem:[%s3 + $0x90] sm:$0xf]
  %v574 = vld [vmem:[%s3 + $0x94] sm:$0xf]
  %v575 = vld [vmem:[%s3 + $0x98] sm:$0xf]
  %v576 = vld [vmem:[%s3 + $0x9c] sm:$0xf]
  %v577 = vld [vmem:[%s3 + $0xa0] sm:$0xf]
  %v578 = vld [vmem:[%s3 + $0xa4] sm:$0xf]
  %v579 = vld [vmem:[%s3 + $0xa8] sm:$0xf]
  %v580 = vld [vmem:[%s3 + $0xac] sm:$0xf]
  %v581 = vld [vmem:[%s3 + $0xb0] sm:$0xf]
  %v582 = vld [vmem:[%s3 + $0xb4] sm:$0xf]
  %v583 = vld [vmem:[%s3 + $0xb8] sm:$0xf]
  %v584 = vld [vmem:[%s3 + $0xbc] sm:$0xf]
  %v585 = vld [vmem:[%s3 + $0xc0] sm:$0xf]
  %v586 = vld [vmem:[%s3 + $0xc4] sm:$0xf]
  %v587 = vld [vmem:[%s3 + $0xc8] sm:$0xf]
  %v588 = vld [vmem:[%s3 + $0xcc] sm:$0xf]
  %v589 = vld [vmem:[%s3 + $0xd0] sm:$0xf]
  %v590 = vld [vmem:[%s3 + $0xd4] sm:$0xf]
  %v591 = vld [vmem:[%s3 + $0xd8] sm:$0xf]
  %v592 = vld [vmem:[%s3 + $0xdc] sm:$0xf]
  %v593 = vld [vmem:[%s3 + $0xe0] sm:$0xf]
  %v594 = vld [vmem:[%s3 + $0xe4] sm:$0xf]
  %v595 = vld [vmem:[%s3 + $0xe8] sm:$0xf]
  %v596 = vld [vmem:[%s3 + $0xec] sm:$0xf]
  %v597 = vld [vmem:[%s3 + $0xf0] sm:$0xf]
  %v598 = vld [vmem:[%s3 + $0xf4] sm:$0xf]
  %v599 = vld [vmem:[%s3 + $0xf8] sm:$0xf]
  %v600 = vld [vmem:[%s3 + $0xfc] sm:$0xf]
  %v601 = vld [vmem:[%s4] sm:$0x1]
  %v603 = vlaneseq
  %v604 = vshrl.u32 %v603, 7
  %v605 = vsub.s32 0, %v604
  %v606 = vrot.slane %v601, %v605
  %v672 = vunpack.c.l.b16 %v537
  %v673 = vunpack.c.l.b16 %v538
  %v674 = vunpack.c.l.b16 %v539
  %v675 = vunpack.c.l.b16 %v540
  %v676 = vunpack.c.l.b16 %v541
  %v677 = vunpack.c.l.b16 %v542
  %v678 = vunpack.c.l.b16 %v543
  %v679 = vunpack.c.l.b16 %v544
  %v680 = vunpack.c.l.b16 %v545
  %v681 = vunpack.c.l.b16 %v546
  %v682 = vunpack.c.l.b16 %v547
  %v683 = vunpack.c.l.b16 %v548
  %v684 = vunpack.c.l.b16 %v549
  %v685 = vunpack.c.l.b16 %v550
  %v686 = vunpack.c.l.b16 %v551
  %v687 = vunpack.c.l.b16 %v552
  %v688 = vunpack.c.l.b16 %v553
  %v689 = vunpack.c.l.b16 %v554
  %v690 = vunpack.c.l.b16 %v555
  %v691 = vunpack.c.l.b16 %v556
  %v692 = vunpack.c.l.b16 %v557
  %v693 = vunpack.c.l.b16 %v558
  %v694 = vunpack.c.l.b16 %v559
  %v695 = vunpack.c.l.b16 %v560
  %v696 = vunpack.c.l.b16 %v561
  %v697 = vunpack.c.l.b16 %v562
  %v698 = vunpack.c.l.b16 %v563
  %v699 = vunpack.c.l.b16 %v564
  %v700 = vunpack.c.l.b16 %v565
  %v701 = vunpack.c.l.b16 %v566
  %v702 = vunpack.c.l.b16 %v567
  %v703 = vunpack.c.l.b16 %v568
  %v704 = vunpack.c.l.b16 %v569
  %v705 = vunpack.c.l.b16 %v570
  %v706 = vunpack.c.l.b16 %v571
  %v707 = vunpack.c.l.b16 %v572
  %v708 = vunpack.c.l.b16 %v573
  %v709 = vunpack.c.l.b16 %v574
  %v710 = vunpack.c.l.b16 %v575
  %v711 = vunpack.c.l.b16 %v576
  %v712 = vunpack.c.l.b16 %v577
  %v713 = vunpack.c.l.b16 %v578
  %v714 = vunpack.c.l.b16 %v579
  %v715 = vunpack.c.l.b16 %v580
  %v716 = vunpack.c.l.b16 %v581
  %v717 = vunpack.c.l.b16 %v582
  %v718 = vunpack.c.l.b16 %v583
  %v719 = vunpack.c.l.b16 %v584
  %v720 = vunpack.c.l.b16 %v585
  %v721 = vunpack.c.l.b16 %v586
  %v722 = vunpack.c.l.b16 %v587
  %v723 = vunpack.c.l.b16 %v588
  %v724 = vunpack.c.l.b16 %v589
  %v725 = vunpack.c.l.b16 %v590
  %v726 = vunpack.c.l.b16 %v591
  %v727 = vunpack.c.l.b16 %v592
  %v728 = vunpack.c.l.b16 %v593
  %v729 = vunpack.c.l.b16 %v594
  %v730 = vunpack.c.l.b16 %v595
  %v731 = vunpack.c.l.b16 %v596
  %v732 = vunpack.c.l.b16 %v597
  %v733 = vunpack.c.l.b16 %v598
  %v734 = vunpack.c.l.b16 %v599
  %v735 = vunpack.c.l.b16 %v600
  %v736 = vpack.c.b16 %v673, %v672
  %v737 = vpack.c.b16 %v675, %v674
  %v738 = vpack.c.b16 %v677, %v676
  %v739 = vpack.c.b16 %v679, %v678
  %v740 = vpack.c.b16 %v681, %v680
  %v741 = vpack.c.b16 %v683, %v682
  %v742 = vpack.c.b16 %v685, %v684
  %v743 = vpack.c.b16 %v687, %v686
  %v744 = vpack.c.b16 %v689, %v688
  %v745 = vpack.c.b16 %v691, %v690
  %v746 = vpack.c.b16 %v693, %v692
  %v747 = vpack.c.b16 %v695, %v694
  %v748 = vpack.c.b16 %v697, %v696
  %v749 = vpack.c.b16 %v699, %v698
  %v750 = vpack.c.b16 %v701, %v700
  %v751 = vpack.c.b16 %v703, %v702
  %v752 = vpack.c.b16 %v705, %v704
  %v753 = vpack.c.b16 %v707, %v706
  %v754 = vpack.c.b16 %v709, %v708
  %v755 = vpack.c.b16 %v711, %v710
  %v756 = vpack.c.b16 %v713, %v712
  %v757 = vpack.c.b16 %v715, %v714
  %v758 = vpack.c.b16 %v717, %v716
  %v759 = vpack.c.b16 %v719, %v718
  %v760 = vpack.c.b16 %v721, %v720
  %v761 = vpack.c.b16 %v723, %v722
  %v762 = vpack.c.b16 %v725, %v724
  %v763 = vpack.c.b16 %v727, %v726
  %v764 = vpack.c.b16 %v729, %v728
  %v765 = vpack.c.b16 %v731, %v730
  %v766 = vpack.c.b16 %v733, %v732
  %v767 = vpack.c.b16 %v735, %v734
  %800 = vmatprep.subr.bf16.mxu0 0
  %801 = vmatpush1.bf16.msra.mxu0 %v743
  %802 = vmatprep.subr.bf16.mxu0 0
  %803 = vmatpush1.bf16.msra.mxu0 %v742
  %804 = vmatprep.subr.bf16.mxu0 0
  %805 = vmatpush1.bf16.msra.mxu0 %v741
  %806 = vmatprep.subr.bf16.mxu0 0
  %807 = vmatpush1.bf16.msra.mxu0 %v740
  %808 = vmatprep.subr.bf16.mxu0 0
  %809 = vmatpush1.bf16.msra.mxu0 %v739
  %810 = vmatprep.subr.bf16.mxu0 0
  %811 = vmatpush1.bf16.msra.mxu0 %v738
  %812 = vmatprep.subr.bf16.mxu0 0
  %813 = vmatpush1.bf16.msra.mxu0 %v737
  %814 = vmatprep.subr.bf16.mxu0 0
  %815 = vmatpush1.bf16.msra.mxu0 %v736
  %816 = vmatprep.subr.bf16.mxu0 0
  %817 = vmatpush2.bf16.msra.mxu0 %v751
  %818 = vmatprep.subr.bf16.mxu0 0
  %819 = vmatpush2.bf16.msra.mxu0 %v750
  %820 = vmatprep.subr.bf16.mxu0 0
  %821 = vmatpush2.bf16.msra.mxu0 %v749
  %822 = vmatprep.subr.bf16.mxu0 0
  %823 = vmatpush2.bf16.msra.mxu0 %v748
  %824 = vmatprep.subr.bf16.mxu0 0
  %825 = vmatpush2.bf16.msra.mxu0 %v747
  %826 = vmatprep.subr.bf16.mxu0 0
  %827 = vmatpush2.bf16.msra.mxu0 %v746
  %828 = vmatprep.subr.bf16.mxu0 0
  %829 = vmatpush2.bf16.msra.mxu0 %v745
  %830 = vmatprep.subr.bf16.mxu0 0
  %831 = vmatpush2.bf16.msra.mxu0 %v744
  %832 = vmatprep.mubr.bf16.mxu0 %v534
  %833 = vmatmul.mubr.bf16.gmra.mxu0 %v533
  %v834 = vpop.f32.mrf.mxu0
  %v835 = vadd.f32 %v606, %v834
  %v836 = vpop.f32.mrf.mxu0
  %v837 = vpop.f32.mrf.mxu0
  %v838 = vadd.f32 %v606, %v837
  %v839 = vpop.f32.mrf.mxu0
  %840 = vdwg.mxu0
  %841 = vmatprep.subr.bf16.mxu0 0
  %842 = vmatpush1.bf16.msra.mxu0 %v759
  %843 = vmatprep.subr.bf16.mxu0 0
  %844 = vmatpush1.bf16.msra.mxu0 %v758
  %845 = vmatprep.subr.bf16.mxu0 0
  %846 = vmatpush1.bf16.msra.mxu0 %v757
  %847 = vmatprep.subr.bf16.mxu0 0
  %848 = vmatpush1.bf16.msra.mxu0 %v756
  %849 = vmatprep.subr.bf16.mxu0 0
  %850 = vmatpush1.bf16.msra.mxu0 %v755
  %851 = vmatprep.subr.bf16.mxu0 0
  %852 = vmatpush1.bf16.msra.mxu0 %v754
  %853 = vmatprep.subr.bf16.mxu0 0
  %854 = vmatpush1.bf16.msra.mxu0 %v753
  %855 = vmatprep.subr.bf16.mxu0 0
  %856 = vmatpush1.bf16.msra.mxu0 %v752
  %857 = vmatprep.subr.bf16.mxu0 0
  %858 = vmatpush2.bf16.msra.mxu0 %v767
  %859 = vmatprep.subr.bf16.mxu0 0
  %860 = vmatpush2.bf16.msra.mxu0 %v766
  %861 = vmatprep.subr.bf16.mxu0 0
  %862 = vmatpush2.bf16.msra.mxu0 %v765
  %863 = vmatprep.subr.bf16.mxu0 0
  %864 = vmatpush2.bf16.msra.mxu0 %v764
  %865 = vmatprep.subr.bf16.mxu0 0
  %866 = vmatpush2.bf16.msra.mxu0 %v763
  %867 = vmatprep.subr.bf16.mxu0 0
  %868 = vmatpush2.bf16.msra.mxu0 %v762
  %869 = vmatprep.subr.bf16.mxu0 0
  %870 = vmatpush2.bf16.msra.mxu0 %v761
  %871 = vmatprep.subr.bf16.mxu0 0
  %872 = vmatpush2.bf16.msra.mxu0 %v760
  %873 = vmatprep.mubr.bf16.mxu0 %v536
  %874 = vmatmul.mubr.bf16.gmra.mxu0 %v535
  %v875 = vpop.f32.mrf.mxu0
  %v876 = vadd.f32 %v835, %v875
  %v877 = vpop.f32.mrf.mxu0
  %v878 = vpop.f32.mrf.mxu0
  %v879 = vadd.f32 %v838, %v878
  %v880 = vpop.f32.mrf.mxu0
  %881 = vdwg.mxu0
  %882 = vst [vmem:[%s5] sm:$0xff] %v876
  %883 = vst [vmem:[%s5 + $0x8] sm:$0xff] %v879
  // Predicated region
  $region22: #{qlearner_forward.7} parent=0 // pred_check
    _
  $region23: #{qlearner_forward.7} parent=0 // pred_check_branch
    %885 = sbr.rel (0) target = $region25
  $region24: #{qlearner_forward.7} parent=0 // pred_region
    _
  $region25: #{qlearner_forward.7} parent=0 // pred_fallthru
    _
  // Predicated region
  $region26: #{qlearner_forward.7} parent=0 // pred_check
    _
  $region27: #{qlearner_forward.7} parent=0 // pred_check_branch
    %887 = sbr.rel (0) target = $region29
  $region28: #{qlearner_forward.7} parent=0 // pred_region
    _
  $region29: #{qlearner_forward.7} parent=0 // pred_fallthru
    _

</llo_original>
